<compile_context>
chip_gen: v6e
topology: v6e:2x2x1
jax: 0.10.0
libtpu: 0.0.40
codegen_flags: <defaults>
</compile_context>

<pallas_src>
import functools

import jax
import jax.numpy as jnp
from jax.experimental import pallas as pl
from jax.experimental.pallas import tpu as pltpu


def _sigmoid(v):
    # Stable sigmoid via tanh (single EUP op, no inf from exp(-v)).
    return 0.5 * (jnp.tanh(0.5 * v) + 1.0)


def _softplus(v):
    # Stable softplus; matches torch.nn.Softplus(beta=1, threshold=20) to <1e-6.
    return jnp.maximum(v, 0.0) + jnp.log1p(jnp.exp(-jnp.abs(v)))


def _vrnn_seq_kernel(
    # per-step data
    x_ref, eps_ref, h0_ref,
    # fused weights, pre-transposed to (in, out)
    wx_ref,      # (x_dim, 4h) = [w1x | w_ih_x]
    wh_ref,      # (h_dim, 5h) = [w1h | wd1h | w_hh]
    wz_ref,      # (z_dim, 4h) = [wd1z | w_ih_z]
    w2_ref,      # (h, h)
    wheads_ref,  # (h, 2z) = [w_mean | w_std]
    wd2_ref,     # (h, h)
    wdm_ref,     # (h, x)
    # biases (f32)
    b1_ref, b2_ref, bheads_ref, bd1_ref, bd2_ref, bdm_ref, bih_ref, bhh_ref,
    # outputs
    dec_mean_ref, h_out_ref,
    # scratch: VMEM-resident recurrent state
    h_scr,
    *, h_dim, z_dim,
):
    t = pl.program_id(0)
    f32 = jnp.float32
    cdt = wx_ref.dtype  # MXU operand dtype (f32 or bf16); accumulation stays f32

    @pl.when(t == 0)
    def _():
        h_scr[...] = h0_ref[...]

    x = x_ref[0]        # (B, x_dim)
    eps = eps_ref[0]    # (B, z_dim)
    h = h_scr[...]      # (B, h_dim)

    relu = lambda v: jnp.maximum(v, 0.0)

    # Shared projections (fused MXU ops).
    xw = jnp.dot(x.astype(cdt), wx_ref[...], preferred_element_type=f32)  # (B, 4h)
    hw = jnp.dot(h.astype(cdt), wh_ref[...], preferred_element_type=f32)  # (B, 5h)

    # ---- encoder: enc(cat([x, h_prev], 1)) ----
    enc1 = relu(xw[:, :h_dim] + hw[:, :h_dim] + b1_ref[...])
    enc_t = relu(
        jnp.dot(enc1.astype(cdt), w2_ref[...], preferred_element_type=f32)
        + b2_ref[...])
    heads = (jnp.dot(enc_t.astype(cdt), wheads_ref[...], preferred_element_type=f32)
             + bheads_ref[...])
    enc_mean = heads[:, :z_dim]
    enc_std = _softplus(heads[:, z_dim:])

    # ---- reparameterized sample ----
    z_t = eps * enc_std + enc_mean

    # ---- decoder: dec(cat([z_t, h_prev], 1)) ----
    zw = jnp.dot(z_t.astype(cdt), wz_ref[...], preferred_element_type=f32)  # (B, 4h)
    dec1 = relu(zw[:, :h_dim] + hw[:, h_dim:2 * h_dim] + bd1_ref[...])
    dec_t = relu(
        jnp.dot(dec1.astype(cdt), wd2_ref[...], preferred_element_type=f32)
        + bd2_ref[...])
    dec_mean_ref[0, :, :] = _sigmoid(
        jnp.dot(dec_t.astype(cdt), wdm_ref[...], preferred_element_type=f32)
        + bdm_ref[...])

    # ---- GRUCell(cat([x, z_t], 1), h_prev), gates ordered (r, z, n) ----
    gi = xw[:, h_dim:] + zw[:, h_dim:] + bih_ref[...]   # (B, 3h)
    gh = hw[:, 2 * h_dim:] + bhh_ref[...]               # (B, 3h)

    r = _sigmoid(gi[:, :h_dim] + gh[:, :h_dim])
    zg = _sigmoid(gi[:, h_dim:2 * h_dim] + gh[:, h_dim:2 * h_dim])
    n = jnp.tanh(gi[:, 2 * h_dim:] + r * gh[:, 2 * h_dim:])
    h_new = (1.0 - zg) * n + zg * h

    h_scr[...] = h_new

    @pl.when(t == pl.num_programs(0) - 1)
    def _():
        h_out_ref[...] = h_new


_WEIGHT_ORDER = ("wx", "wh", "wz", "w2", "wheads", "wd2", "wdm",
                 "b1", "b2", "bheads", "bd1", "bd2", "bdm", "bih", "bhh")


def pack_vrnn_params(p, matmul_dtype=jnp.float32):
    """Fuse the 21 Linear/GRU tensors into 7 weight + 8 bias buffers.

    Weights (MXU operands) optionally stored in bf16; biases stay f32 so all
    elementwise math remains f32 (v5e has no bf16 VPU/EUP).
    """
    cat = lambda *a: jnp.concatenate(a, axis=1).astype(matmul_dtype)
    return {
        "wx": cat(p["w1x"], p["wihx"]),
        "wh": cat(p["w1h"], p["wd1h"], p["whh"]),
        "wz": cat(p["wd1z"], p["wihz"]),
        "w2": p["w2"].astype(matmul_dtype),
        "wheads": cat(p["wm"], p["ws"]),
        "wd2": p["wd2"].astype(matmul_dtype),
        "wdm": p["wdm"].astype(matmul_dtype),
        "b1": p["b1"], "b2": p["b2"],
        "bheads": jnp.concatenate([p["bm"], p["bs"]], axis=1),
        "bd1": p["bd1"], "bd2": p["bd2"], "bdm": p["bdm"],
        "bih": p["bih"], "bhh": p["bhh"],
    }


def vrnn_forward_seq(packed, x_seq, h0, eps_seq):
    """Runs T VRNNCell steps in one pallas_call (grid over timesteps).

    Returns (dec_mean_seq [T,B,x_dim], h_final [B,h_dim]).
    """
    T, B, x_dim = x_seq.shape
    h_dim = h0.shape[1]
    z_dim = eps_seq.shape[2]

    weights = [packed[k] for k in _WEIGHT_ORDER]

    def const_spec(a):
        # Grid-invariant: block == full array, constant index_map -> DMA'd once,
        # VMEM-resident for the whole sequence.
        return pl.BlockSpec(a.shape, lambda t, _nd=a.ndim: (0,) * _nd)

    in_specs = (
        [pl.BlockSpec((1, B, x_dim), lambda t: (t, 0, 0)),
         pl.BlockSpec((1, B, z_dim), lambda t: (t, 0, 0)),
         pl.BlockSpec((B, h_dim), lambda t: (0, 0))]
        + [const_spec(w) for w in weights]
    )
    out_specs = [
        pl.BlockSpec((1, B, x_dim), lambda t: (t, 0, 0)),
        pl.BlockSpec((B, h_dim), lambda t: (0, 0)),
    ]
    out_shape = [
        jax.ShapeDtypeStruct((T, B, x_dim), jnp.float32),
        jax.ShapeDtypeStruct((B, h_dim), jnp.float32),
    ]

    kernel = functools.partial(_vrnn_seq_kernel, h_dim=h_dim, z_dim=z_dim)

    dec_mean_seq, h_final = pl.pallas_call(
        kernel,
        out_shape=out_shape,
        grid_spec=pltpu.PrefetchScalarGridSpec(
            num_scalar_prefetch=0,
            grid=(T,),
            in_specs=in_specs,
            out_specs=out_specs,
            scratch_shapes=[pltpu.VMEM((B, h_dim), jnp.float32)],
        ),
        compiler_params=pltpu.CompilerParams(
            # Time axis is a carried recurrence -> must stay "arbitrary".
            dimension_semantics=("arbitrary",),
            vmem_limit_bytes=32 * 1024 * 1024,
        ),
    )(x_seq, eps_seq, h0, *weights)
    return dec_mean_seq, h_final


def vrnn_cell_forward(packed, x, h_prev, eps):
    """Single-step API matching the PyTorch module's forward(x, h_prev)."""
    dec_mean, h_new = vrnn_forward_seq(packed, x[None], h_prev, eps[None])
    return dec_mean[0], h_new


def init_vrnn_params(key, x_dim, h_dim, z_dim):
    """PyTorch-style init; weights stored as (in_features, out_features)."""
    def linear(k, fan_in, fan_out):
        kw, kb = jax.random.split(k)
        bound = 1.0 / jnp.sqrt(float(fan_in))
        w = jax.random.uniform(kw, (fan_in, fan_out), jnp.float32, -bound, bound)
        b = jax.random.uniform(kb, (1, fan_out), jnp.float32, -bound, bound)
        return w, b

    keys = jax.random.split(key, 9)
    p = {}
    w1, p["b1"] = linear(keys[0], x_dim + h_dim, h_dim)
    p["w1x"], p["w1h"] = w1[:x_dim], w1[x_dim:]
    p["w2"], p["b2"] = linear(keys[1], h_dim, h_dim)
    p["wm"], p["bm"] = linear(keys[2], h_dim, z_dim)
    p["ws"], p["bs"] = linear(keys[3], h_dim, z_dim)
    wd1, p["bd1"] = linear(keys[4], z_dim + h_dim, h_dim)
    p["wd1z"], p["wd1h"] = wd1[:z_dim], wd1[z_dim:]
    p["wd2"], p["bd2"] = linear(keys[5], h_dim, h_dim)
    p["wdm"], p["bdm"] = linear(keys[6], h_dim, x_dim)
    wih, p["bih"] = linear(keys[7], x_dim + z_dim, 3 * h_dim)
    p["wihx"], p["wihz"] = wih[:x_dim], wih[x_dim:]
    p["whh"], p["bhh"] = linear(keys[8], h_dim, 3 * h_dim)
    return p


# ------------------------- pure-JAX references -------------------------

def vrnn_cell_ref(p, x, h_prev, eps):
    relu = lambda v: jnp.maximum(v, 0.0)
    enc1 = relu(x @ p["w1x"] + h_prev @ p["w1h"] + p["b1"])
    enc_t = relu(enc1 @ p["w2"] + p["b2"])
    mean = enc_t @ p["wm"] + p["bm"]
    std = jax.nn.softplus(enc_t @ p["ws"] + p["bs"])
    z = eps * std + mean
    dec1 = relu(z @ p["wd1z"] + h_prev @ p["wd1h"] + p["bd1"])
    dec_t = relu(dec1 @ p["wd2"] + p["bd2"])
    dec_mean = jax.nn.sigmoid(dec_t @ p["wdm"] + p["bdm"])
    gi = x @ p["wihx"] + z @ p["wihz"] + p["bih"]
    gh = h_prev @ p["whh"] + p["bhh"]
    H = h_prev.shape[1]
    r = jax.nn.sigmoid(gi[:, :H] + gh[:, :H])
    zg = jax.nn.sigmoid(gi[:, H:2 * H] + gh[:, H:2 * H])
    n = jnp.tanh(gi[:, 2 * H:] + r * gh[:, 2 * H:])
    h_new = (1.0 - zg) * n + zg * h_prev
    return dec_mean, h_new


def vrnn_seq_ref(p, x_seq, h0, eps_seq):
    def step(h, xe):
        x, eps = xe
        dm, h_new = vrnn_cell_ref(p, x, h, eps)
        return h_new, dm
    h_final, dms = jax.lax.scan(step, h0, (x_seq, eps_seq))
    return dms, h_final


if __name__ == "__main__":
    x_dim, h_dim, z_dim, batch, seq = 16, 32, 8, 8, 8

    root = jax.random.PRNGKey(0)
    k_param, k_x, k_h, k_eps = jax.random.split(root, 4)

    params = init_vrnn_params(k_param, x_dim, h_dim, z_dim)
    x_seq = jax.random.normal(k_x, (seq, batch, x_dim), jnp.float32)
    h0 = jax.random.normal(k_h, (batch, h_dim), jnp.float32)
    eps_seq = jax.random.normal(k_eps, (seq, batch, z_dim), jnp.float32)

    dm_ref, h_final_ref = vrnn_seq_ref(params, x_seq, h0, eps_seq)

    # f32 MXU operands: tight check against the unfused reference.
    packed_f32 = pack_vrnn_params(params, jnp.float32)
    dm, h_final = vrnn_forward_seq(packed_f32, x_seq, h0, eps_seq)
    jax.block_until_ready((dm, h_final))
    assert dm.shape == (seq, batch, x_dim) and h_final.shape == (batch, h_dim)
    assert jnp.allclose(dm, dm_ref, atol=1e-4, rtol=1e-4)
    assert jnp.allclose(h_final, h_final_ref, atol=1e-4, rtol=1e-4)

    # Single-step call (module-equivalent signature).
    dm1, h1 = vrnn_cell_forward(packed_f32, x_seq[0], h0, eps_seq[0])
    dm1_ref, h1_ref = vrnn_cell_ref(params, x_seq[0], h0, eps_seq[0])
    jax.block_until_ready((dm1, h1))
    assert jnp.allclose(dm1, dm1_ref, atol=1e-4, rtol=1e-4)
    assert jnp.allclose(h1, h1_ref, atol=1e-4, rtol=1e-4)

    # bf16 MXU operands (v6e/v7x fast path), f32 accumulation + elementwise.
    packed_bf16 = pack_vrnn_params(params, jnp.bfloat16)
    dm_b, h_b = vrnn_forward_seq(packed_bf16, x_seq, h0, eps_seq)
    jax.block_until_ready((dm_b, h_b))
    assert jnp.allclose(dm_b, dm_ref, atol=1e-1, rtol=1e-1)
    assert jnp.allclose(h_b, h_final_ref, atol=1e-1, rtol=1e-1)

    print("KERNEL_OK")
</pallas_src>

<mosaic_0001>
module attributes {stable_mosaic.version = 11 : i64} {
  func.func @_vrnn_seq_kernel(%arg0: i32, %arg1: memref<1x8x16xf32, #tpu.memory_space<vmem>>, %arg2: memref<1x8x8xf32, #tpu.memory_space<vmem>>, %arg3: memref<8x32xf32, #tpu.memory_space<vmem>>, %arg4: memref<16x128xf32, #tpu.memory_space<vmem>>, %arg5: memref<32x160xf32, #tpu.memory_space<vmem>>, %arg6: memref<8x128xf32, #tpu.memory_space<vmem>>, %arg7: memref<32x32xf32, #tpu.memory_space<vmem>>, %arg8: memref<32x16xf32, #tpu.memory_space<vmem>>, %arg9: memref<32x32xf32, #tpu.memory_space<vmem>>, %arg10: memref<32x16xf32, #tpu.memory_space<vmem>>, %arg11: memref<1x32xf32, #tpu.memory_space<vmem>>, %arg12: memref<1x32xf32, #tpu.memory_space<vmem>>, %arg13: memref<1x16xf32, #tpu.memory_space<vmem>>, %arg14: memref<1x32xf32, #tpu.memory_space<vmem>>, %arg15: memref<1x32xf32, #tpu.memory_space<vmem>>, %arg16: memref<1x16xf32, #tpu.memory_space<vmem>>, %arg17: memref<1x96xf32, #tpu.memory_space<vmem>>, %arg18: memref<1x96xf32, #tpu.memory_space<vmem>>, %arg19: memref<1x8x16xf32, #tpu.memory_space<vmem>>, %arg20: memref<8x32xf32, #tpu.memory_space<vmem>>, %arg21: memref<8x32xf32, #tpu.memory_space<vmem>>) attributes {dimension_semantics = [#tpu.dimension_semantics<arbitrary>], iteration_bounds = array<i64: 8>, scalar_prefetch = 0 : i64, scratch_operands = 1 : i64, tpu.core_type = #tpu.core_type<tc>, window_params = [{transform_indices = @transform_0, window_bounds = array<i64: 1, 8, 16>}, {transform_indices = @transform_1, window_bounds = array<i64: 1, 8, 8>}, {pipeline_mode = #tpu.pipeline_mode<synchronous>, transform_indices = @transform_2, window_bounds = array<i64: 8, 32>}, {pipeline_mode = #tpu.pipeline_mode<synchronous>, transform_indices = @transform_3, window_bounds = array<i64: 16, 128>}, {pipeline_mode = #tpu.pipeline_mode<synchronous>, transform_indices = @transform_4, window_bounds = array<i64: 32, 160>}, {pipeline_mode = #tpu.pipeline_mode<synchronous>, transform_indices = @transform_5, window_bounds = array<i64: 8, 128>}, {pipeline_mode = #tpu.pipeline_mode<synchronous>, transform_indices = @transform_6, window_bounds = array<i64: 32, 32>}, {pipeline_mode = #tpu.pipeline_mode<synchronous>, transform_indices = @transform_7, window_bounds = array<i64: 32, 16>}, {pipeline_mode = #tpu.pipeline_mode<synchronous>, transform_indices = @transform_8, window_bounds = array<i64: 32, 32>}, {pipeline_mode = #tpu.pipeline_mode<synchronous>, transform_indices = @transform_9, window_bounds = array<i64: 32, 16>}, {pipeline_mode = #tpu.pipeline_mode<synchronous>, transform_indices = @transform_10, window_bounds = array<i64: 1, 32>}, {pipeline_mode = #tpu.pipeline_mode<synchronous>, transform_indices = @transform_11, window_bounds = array<i64: 1, 32>}, {pipeline_mode = #tpu.pipeline_mode<synchronous>, transform_indices = @transform_12, window_bounds = array<i64: 1, 16>}, {pipeline_mode = #tpu.pipeline_mode<synchronous>, transform_indices = @transform_13, window_bounds = array<i64: 1, 32>}, {pipeline_mode = #tpu.pipeline_mode<synchronous>, transform_indices = @transform_14, window_bounds = array<i64: 1, 32>}, {pipeline_mode = #tpu.pipeline_mode<synchronous>, transform_indices = @transform_15, window_bounds = array<i64: 1, 16>}, {pipeline_mode = #tpu.pipeline_mode<synchronous>, transform_indices = @transform_16, window_bounds = array<i64: 1, 96>}, {pipeline_mode = #tpu.pipeline_mode<synchronous>, transform_indices = @transform_17, window_bounds = array<i64: 1, 96>}, {transform_indices = @transform_18, window_bounds = array<i64: 1, 8, 16>}, {pipeline_mode = #tpu.pipeline_mode<synchronous>, transform_indices = @transform_19, window_bounds = array<i64: 8, 32>}]} {
    %c0_i32 = arith.constant 0 : i32
    %0 = arith.cmpi eq, %arg0, %c0_i32 : i32
    %1 = arith.extui %0 : i1 to i32
    %c0_i32_0 = arith.constant 0 : i32
    %2 = arith.cmpi ne, %1, %c0_i32_0 : i32
    scf.if %2 {
      %c0_66 = arith.constant 0 : index
      %c0_67 = arith.constant 0 : index
      %120 = vector.load %arg3[%c0_66, %c0_67] : memref<8x32xf32, #tpu.memory_space<vmem>>, vector<8x32xf32>
      %c0_68 = arith.constant 0 : index
      %c0_69 = arith.constant 0 : index
      %121 = vector.load %arg21[%c0_68, %c0_69] : memref<8x32xf32, #tpu.memory_space<vmem>>, vector<8x32xf32>
      tpu.vector_store %arg21[%c0_68, %c0_69], %120 {strides = array<i32>} : memref<8x32xf32, #tpu.memory_space<vmem>>, vector<8x32xf32>,
    } else {
    }
    %c0 = arith.constant 0 : index
    %c0_1 = arith.constant 0 : index
    %c0_2 = arith.constant 0 : index
    %3 = vector.load %arg1[%c0, %c0_1, %c0_2] : memref<1x8x16xf32, #tpu.memory_space<vmem>>, vector<1x8x16xf32>
    %4 = vector.shape_cast %3 : vector<1x8x16xf32> to vector<8x16xf32>
    %c0_3 = arith.constant 0 : index
    %c0_4 = arith.constant 0 : index
    %c0_5 = arith.constant 0 : index
    %5 = vector.load %arg2[%c0_3, %c0_4, %c0_5] : memref<1x8x8xf32, #tpu.memory_space<vmem>>, vector<1x8x8xf32>
    %6 = vector.shape_cast %5 : vector<1x8x8xf32> to vector<8x8xf32>
    %c0_6 = arith.constant 0 : index
    %c0_7 = arith.constant 0 : index
    %7 = vector.load %arg21[%c0_6, %c0_7] : memref<8x32xf32, #tpu.memory_space<vmem>>, vector<8x32xf32>
    %c0_8 = arith.constant 0 : index
    %c0_9 = arith.constant 0 : index
    %8 = vector.load %arg4[%c0_8, %c0_9] : memref<16x128xf32, #tpu.memory_space<vmem>>, vector<16x128xf32>
    %cst = arith.constant dense<0.000000e+00> : vector<8x128xf32>
    %9 = tpu.matmul %4, %8, %cst {dimension_numbers = #tpu.dot_dimension_numbers<[1], [0], [0], [1], [0, 0, 1, 1], [], []>} : vector<8x16xf32>, vector<16x128xf32>, vector<8x128xf32> -> vector<8x128xf32>
    %c0_10 = arith.constant 0 : index
    %c0_11 = arith.constant 0 : index
    %10 = vector.load %arg5[%c0_10, %c0_11] : memref<32x160xf32, #tpu.memory_space<vmem>>, vector<32x160xf32>
    %cst_12 = arith.constant dense<0.000000e+00> : vector<8x160xf32>
    %11 = tpu.matmul %7, %10, %cst_12 {dimension_numbers = #tpu.dot_dimension_numbers<[1], [0], [0], [1], [0, 0, 1, 1], [], []>} : vector<8x32xf32>, vector<32x160xf32>, vector<8x160xf32> -> vector<8x160xf32>
    %12 = vector.extract_strided_slice %9 {offsets = [0, 0], sizes = [8, 32], strides = [1, 1]} : vector<8x128xf32> to vector<8x32xf32>
    %13 = vector.extract_strided_slice %11 {offsets = [0, 0], sizes = [8, 32], strides = [1, 1]} : vector<8x160xf32> to vector<8x32xf32>
    %14 = arith.addf %12, %13 : vector<8x32xf32>
    %c0_13 = arith.constant 0 : index
    %c0_14 = arith.constant 0 : index
    %15 = vector.load %arg11[%c0_13, %c0_14] : memref<1x32xf32, #tpu.memory_space<vmem>>, vector<1x32xf32>
    %16 = vector.broadcast %15 : vector<1x32xf32> to vector<8x32xf32>
    %17 = arith.addf %14, %16 : vector<8x32xf32>
    %cst_15 = arith.constant 0.000000e+00 : f32
    %18 = vector.broadcast %cst_15 : f32 to vector<8x32xf32>
    %19 = arith.maximumf %17, %18 : vector<8x32xf32>
    %c0_16 = arith.constant 0 : index
    %c0_17 = arith.constant 0 : index
    %20 = vector.load %arg7[%c0_16, %c0_17] : memref<32x32xf32, #tpu.memory_space<vmem>>, vector<32x32xf32>
    %cst_18 = arith.constant dense<0.000000e+00> : vector<8x32xf32>
    %21 = tpu.matmul %19, %20, %cst_18 {dimension_numbers = #tpu.dot_dimension_numbers<[1], [0], [0], [1], [0, 0, 1, 1], [], []>} : vector<8x32xf32>, vector<32x32xf32>, vector<8x32xf32> -> vector<8x32xf32>
    %c0_19 = arith.constant 0 : index
    %c0_20 = arith.constant 0 : index
    %22 = vector.load %arg12[%c0_19, %c0_20] : memref<1x32xf32, #tpu.memory_space<vmem>>, vector<1x32xf32>
    %23 = vector.broadcast %22 : vector<1x32xf32> to vector<8x32xf32>
    %24 = arith.addf %21, %23 : vector<8x32xf32>
    %cst_21 = arith.constant 0.000000e+00 : f32
    %25 = vector.broadcast %cst_21 : f32 to vector<8x32xf32>
    %26 = arith.maximumf %24, %25 : vector<8x32xf32>
    %c0_22 = arith.constant 0 : index
    %c0_23 = arith.constant 0 : index
    %27 = vector.load %arg8[%c0_22, %c0_23] : memref<32x16xf32, #tpu.memory_space<vmem>>, vector<32x16xf32>
    %cst_24 = arith.constant dense<0.000000e+00> : vector<8x16xf32>
    %28 = tpu.matmul %26, %27, %cst_24 {dimension_numbers = #tpu.dot_dimension_numbers<[1], [0], [0], [1], [0, 0, 1, 1], [], []>} : vector<8x32xf32>, vector<32x16xf32>, vector<8x16xf32> -> vector<8x16xf32>
    %c0_25 = arith.constant 0 : index
    %c0_26 = arith.constant 0 : index
    %29 = vector.load %arg13[%c0_25, %c0_26] : memref<1x16xf32, #tpu.memory_space<vmem>>, vector<1x16xf32>
    %30 = vector.broadcast %29 : vector<1x16xf32> to vector<8x16xf32>
    %31 = arith.addf %28, %30 : vector<8x16xf32>
    %32 = vector.extract_strided_slice %31 {offsets = [0, 0], sizes = [8, 8], strides = [1, 1]} : vector<8x16xf32> to vector<8x8xf32>
    %33 = vector.extract_strided_slice %31 {offsets = [0, 8], sizes = [8, 8], strides = [1, 1]} : vector<8x16xf32> to vector<8x8xf32>
    %cst_27 = arith.constant 0.000000e+00 : f32
    %34 = vector.broadcast %cst_27 : f32 to vector<8x8xf32>
    %35 = arith.maximumf %33, %34 : vector<8x8xf32>
    %36 = math.absf %33 : vector<8x8xf32>
    %cst_28 = arith.constant 0.000000e+00 : f32
    %37 = vector.broadcast %cst_28 : f32 to vector<8x8xf32>
    %38 = arith.subf %37, %36 : vector<8x8xf32>
    %39 = math.exp %38 : vector<8x8xf32>
    %40 = math.log1p %39 : vector<8x8xf32>
    %41 = arith.addf %35, %40 : vector<8x8xf32>
    %42 = arith.mulf %6, %41 : vector<8x8xf32>
    %43 = arith.addf %42, %32 : vector<8x8xf32>
    %c0_29 = arith.constant 0 : index
    %c0_30 = arith.constant 0 : index
    %44 = vector.load %arg6[%c0_29, %c0_30] : memref<8x128xf32, #tpu.memory_space<vmem>>, vector<8x128xf32>
    %cst_31 = arith.constant dense<0.000000e+00> : vector<8x128xf32>
    %45 = tpu.matmul %43, %44, %cst_31 {dimension_numbers = #tpu.dot_dimension_numbers<[1], [0], [0], [1], [0, 0, 1, 1], [], []>} : vector<8x8xf32>, vector<8x128xf32>, vector<8x128xf32> -> vector<8x128xf32>
    %46 = vector.extract_strided_slice %45 {offsets = [0, 0], sizes = [8, 32], strides = [1, 1]} : vector<8x128xf32> to vector<8x32xf32>
    %47 = vector.extract_strided_slice %11 {offsets = [0, 32], sizes = [8, 32], strides = [1, 1]} : vector<8x160xf32> to vector<8x32xf32>
    %48 = arith.addf %46, %47 : vector<8x32xf32>
    %c0_32 = arith.constant 0 : index
    %c0_33 = arith.constant 0 : index
    %49 = vector.load %arg14[%c0_32, %c0_33] : memref<1x32xf32, #tpu.memory_space<vmem>>, vector<1x32xf32>
    %50 = vector.broadcast %49 : vector<1x32xf32> to vector<8x32xf32>
    %51 = arith.addf %48, %50 : vector<8x32xf32>
    %cst_34 = arith.constant 0.000000e+00 : f32
    %52 = vector.broadcast %cst_34 : f32 to vector<8x32xf32>
    %53 = arith.maximumf %51, %52 : vector<8x32xf32>
    %c0_35 = arith.constant 0 : index
    %c0_36 = arith.constant 0 : index
    %54 = vector.load %arg9[%c0_35, %c0_36] : memref<32x32xf32, #tpu.memory_space<vmem>>, vector<32x32xf32>
    %cst_37 = arith.constant dense<0.000000e+00> : vector<8x32xf32>
    %55 = tpu.matmul %53, %54, %cst_37 {dimension_numbers = #tpu.dot_dimension_numbers<[1], [0], [0], [1], [0, 0, 1, 1], [], []>} : vector<8x32xf32>, vector<32x32xf32>, vector<8x32xf32> -> vector<8x32xf32>
    %c0_38 = arith.constant 0 : index
    %c0_39 = arith.constant 0 : index
    %56 = vector.load %arg15[%c0_38, %c0_39] : memref<1x32xf32, #tpu.memory_space<vmem>>, vector<1x32xf32>
    %57 = vector.broadcast %56 : vector<1x32xf32> to vector<8x32xf32>
    %58 = arith.addf %55, %57 : vector<8x32xf32>
    %cst_40 = arith.constant 0.000000e+00 : f32
    %59 = vector.broadcast %cst_40 : f32 to vector<8x32xf32>
    %60 = arith.maximumf %58, %59 : vector<8x32xf32>
    %c0_41 = arith.constant 0 : index
    %c0_42 = arith.constant 0 : index
    %61 = vector.load %arg10[%c0_41, %c0_42] : memref<32x16xf32, #tpu.memory_space<vmem>>, vector<32x16xf32>
    %cst_43 = arith.constant dense<0.000000e+00> : vector<8x16xf32>
    %62 = tpu.matmul %60, %61, %cst_43 {dimension_numbers = #tpu.dot_dimension_numbers<[1], [0], [0], [1], [0, 0, 1, 1], [], []>} : vector<8x32xf32>, vector<32x16xf32>, vector<8x16xf32> -> vector<8x16xf32>
    %c0_44 = arith.constant 0 : index
    %c0_45 = arith.constant 0 : index
    %63 = vector.load %arg16[%c0_44, %c0_45] : memref<1x16xf32, #tpu.memory_space<vmem>>, vector<1x16xf32>
    %64 = vector.broadcast %63 : vector<1x16xf32> to vector<8x16xf32>
    %65 = arith.addf %62, %64 : vector<8x16xf32>
    %cst_46 = arith.constant 5.000000e-01 : f32
    %66 = vector.broadcast %cst_46 : f32 to vector<8x16xf32>
    %67 = arith.mulf %66, %65 : vector<8x16xf32>
    %68 = math.tanh %67 : vector<8x16xf32>
    %cst_47 = arith.constant 1.000000e+00 : f32
    %69 = vector.broadcast %cst_47 : f32 to vector<8x16xf32>
    %70 = arith.addf %68, %69 : vector<8x16xf32>
    %cst_48 = arith.constant 5.000000e-01 : f32
    %71 = vector.broadcast %cst_48 : f32 to vector<8x16xf32>
    %72 = arith.mulf %71, %70 : vector<8x16xf32>
    %c0_49 = arith.constant 0 : index
    %c0_50 = arith.constant 0 : index
    %c0_51 = arith.constant 0 : index
    %73 = vector.load %arg19[%c0_49, %c0_50, %c0_51] : memref<1x8x16xf32, #tpu.memory_space<vmem>>, vector<1x8x16xf32>
    %74 = vector.shape_cast %73 : vector<1x8x16xf32> to vector<8x16xf32>
    %75 = vector.shape_cast %72 : vector<8x16xf32> to vector<1x8x16xf32>
    tpu.vector_store %arg19[%c0_49, %c0_50, %c0_51], %75 {strides = array<i32>} : memref<1x8x16xf32, #tpu.memory_space<vmem>>, vector<1x8x16xf32>,
    %76 = vector.extract_strided_slice %9 {offsets = [0, 32], sizes = [8, 96], strides = [1, 1]} : vector<8x128xf32> to vector<8x96xf32>
    %77 = vector.extract_strided_slice %45 {offsets = [0, 32], sizes = [8, 96], strides = [1, 1]} : vector<8x128xf32> to vector<8x96xf32>
    %78 = arith.addf %76, %77 : vector<8x96xf32>
    %c0_52 = arith.constant 0 : index
    %c0_53 = arith.constant 0 : index
    %79 = vector.load %arg17[%c0_52, %c0_53] : memref<1x96xf32, #tpu.memory_space<vmem>>, vector<1x96xf32>
    %80 = vector.broadcast %79 : vector<1x96xf32> to vector<8x96xf32>
    %81 = arith.addf %78, %80 : vector<8x96xf32>
    %82 = vector.extract_strided_slice %11 {offsets = [0, 64], sizes = [8, 96], strides = [1, 1]} : vector<8x160xf32> to vector<8x96xf32>
    %c0_54 = arith.constant 0 : index
    %c0_55 = arith.constant 0 : index
    %83 = vector.load %arg18[%c0_54, %c0_55] : memref<1x96xf32, #tpu.memory_space<vmem>>, vector<1x96xf32>
    %84 = vector.broadcast %83 : vector<1x96xf32> to vector<8x96xf32>
    %85 = arith.addf %82, %84 : vector<8x96xf32>
    %86 = vector.extract_strided_slice %81 {offsets = [0, 0], sizes = [8, 32], strides = [1, 1]} : vector<8x96xf32> to vector<8x32xf32>
    %87 = vector.extract_strided_slice %85 {offsets = [0, 0], sizes = [8, 32], strides = [1, 1]} : vector<8x96xf32> to vector<8x32xf32>
    %88 = arith.addf %86, %87 : vector<8x32xf32>
    %cst_56 = arith.constant 5.000000e-01 : f32
    %89 = vector.broadcast %cst_56 : f32 to vector<8x32xf32>
    %90 = arith.mulf %89, %88 : vector<8x32xf32>
    %91 = math.tanh %90 : vector<8x32xf32>
    %cst_57 = arith.constant 1.000000e+00 : f32
    %92 = vector.broadcast %cst_57 : f32 to vector<8x32xf32>
    %93 = arith.addf %91, %92 : vector<8x32xf32>
    %cst_58 = arith.constant 5.000000e-01 : f32
    %94 = vector.broadcast %cst_58 : f32 to vector<8x32xf32>
    %95 = arith.mulf %94, %93 : vector<8x32xf32>
    %96 = vector.extract_strided_slice %81 {offsets = [0, 32], sizes = [8, 32], strides = [1, 1]} : vector<8x96xf32> to vector<8x32xf32>
    %97 = vector.extract_strided_slice %85 {offsets = [0, 32], sizes = [8, 32], strides = [1, 1]} : vector<8x96xf32> to vector<8x32xf32>
    %98 = arith.addf %96, %97 : vector<8x32xf32>
    %cst_59 = arith.constant 5.000000e-01 : f32
    %99 = vector.broadcast %cst_59 : f32 to vector<8x32xf32>
    %100 = arith.mulf %99, %98 : vector<8x32xf32>
    %101 = math.tanh %100 : vector<8x32xf32>
    %cst_60 = arith.constant 1.000000e+00 : f32
    %102 = vector.broadcast %cst_60 : f32 to vector<8x32xf32>
    %103 = arith.addf %101, %102 : vector<8x32xf32>
    %cst_61 = arith.constant 5.000000e-01 : f32
    %104 = vector.broadcast %cst_61 : f32 to vector<8x32xf32>
    %105 = arith.mulf %104, %103 : vector<8x32xf32>
    %106 = vector.extract_strided_slice %81 {offsets = [0, 64], sizes = [8, 32], strides = [1, 1]} : vector<8x96xf32> to vector<8x32xf32>
    %107 = vector.extract_strided_slice %85 {offsets = [0, 64], sizes = [8, 32], strides = [1, 1]} : vector<8x96xf32> to vector<8x32xf32>
    %108 = arith.mulf %95, %107 : vector<8x32xf32>
    %109 = arith.addf %106, %108 : vector<8x32xf32>
    %110 = math.tanh %109 : vector<8x32xf32>
    %cst_62 = arith.constant 1.000000e+00 : f32
    %111 = vector.broadcast %cst_62 : f32 to vector<8x32xf32>
    %112 = arith.subf %111, %105 : vector<8x32xf32>
    %113 = arith.mulf %112, %110 : vector<8x32xf32>
    %114 = arith.mulf %105, %7 : vector<8x32xf32>
    %115 = arith.addf %113, %114 : vector<8x32xf32>
    %c0_63 = arith.constant 0 : index
    %c0_64 = arith.constant 0 : index
    %116 = vector.load %arg21[%c0_63, %c0_64] : memref<8x32xf32, #tpu.memory_space<vmem>>, vector<8x32xf32>
    tpu.vector_store %arg21[%c0_63, %c0_64], %115 {strides = array<i32>} : memref<8x32xf32, #tpu.memory_space<vmem>>, vector<8x32xf32>,
    %c7_i32 = arith.constant 7 : i32
    %117 = arith.cmpi eq, %arg0, %c7_i32 : i32
    %118 = arith.extui %117 : i1 to i32
    %c0_i32_65 = arith.constant 0 : i32
    %119 = arith.cmpi ne, %118, %c0_i32_65 : i32
    scf.if %119 {
      %c0_66 = arith.constant 0 : index
      %c0_67 = arith.constant 0 : index
      %120 = vector.load %arg20[%c0_66, %c0_67] : memref<8x32xf32, #tpu.memory_space<vmem>>, vector<8x32xf32>
      tpu.vector_store %arg20[%c0_66, %c0_67], %115 {strides = array<i32>} : memref<8x32xf32, #tpu.memory_space<vmem>>, vector<8x32xf32>,
    } else {
    }
    return
  }
  func.func @transform_0(%arg0: i32) -> (i32, i32, i32) {
    %c0_i32 = arith.constant 0 : i32
    %c0_i32_0 = arith.constant 0 : i32
    %c0_i32_1 = arith.constant 0 : i32
    return %arg0, %c0_i32, %c0_i32_0 : i32, i32, i32
  }
  func.func @transform_1(%arg0: i32) -> (i32, i32, i32) {
    %c0_i32 = arith.constant 0 : i32
    %c0_i32_0 = arith.constant 0 : i32
    %c0_i32_1 = arith.constant 0 : i32
    return %arg0, %c0_i32, %c0_i32_0 : i32, i32, i32
  }
  func.func @transform_2(%arg0: i32) -> (i32, i32) {
    %c0_i32 = arith.constant 0 : i32
    %c0_i32_0 = arith.constant 0 : i32
    %c0_i32_1 = arith.constant 0 : i32
    return %c0_i32, %c0_i32_0 : i32, i32
  }
  func.func @transform_3(%arg0: i32) -> (i32, i32) {
    %c0_i32 = arith.constant 0 : i32
    %c0_i32_0 = arith.constant 0 : i32
    %c0_i32_1 = arith.constant 0 : i32
    return %c0_i32, %c0_i32_0 : i32, i32
  }
  func.func @transform_4(%arg0: i32) -> (i32, i32) {
    %c0_i32 = arith.constant 0 : i32
    %c0_i32_0 = arith.constant 0 : i32
    %c0_i32_1 = arith.constant 0 : i32
    return %c0_i32, %c0_i32_0 : i32, i32
  }
  func.func @transform_5(%arg0: i32) -> (i32, i32) {
    %c0_i32 = arith.constant 0 : i32
    %c0_i32_0 = arith.constant 0 : i32
    %c0_i32_1 = arith.constant 0 : i32
    return %c0_i32, %c0_i32_0 : i32, i32
  }
  func.func @transform_6(%arg0: i32) -> (i32, i32) {
    %c0_i32 = arith.constant 0 : i32
    %c0_i32_0 = arith.constant 0 : i32
    %c0_i32_1 = arith.constant 0 : i32
    return %c0_i32, %c0_i32_0 : i32, i32
  }
  func.func @transform_7(%arg0: i32) -> (i32, i32) {
    %c0_i32 = arith.constant 0 : i32
    %c0_i32_0 = arith.constant 0 : i32
    %c0_i32_1 = arith.constant 0 : i32
    return %c0_i32, %c0_i32_0 : i32, i32
  }
  func.func @transform_8(%arg0: i32) -> (i32, i32) {
    %c0_i32 = arith.constant 0 : i32
    %c0_i32_0 = arith.constant 0 : i32
    %c0_i32_1 = arith.constant 0 : i32
    return %c0_i32, %c0_i32_0 : i32, i32
  }
  func.func @transform_9(%arg0: i32) -> (i32, i32) {
    %c0_i32 = arith.constant 0 : i32
    %c0_i32_0 = arith.constant 0 : i32
    %c0_i32_1 = arith.constant 0 : i32
    return %c0_i32, %c0_i32_0 : i32, i32
  }
  func.func @transform_10(%arg0: i32) -> (i32, i32) {
    %c0_i32 = arith.constant 0 : i32
    %c0_i32_0 = arith.constant 0 : i32
    %c0_i32_1 = arith.constant 0 : i32
    return %c0_i32, %c0_i32_0 : i32, i32
  }
  func.func @transform_11(%arg0: i32) -> (i32, i32) {
    %c0_i32 = arith.constant 0 : i32
    %c0_i32_0 = arith.constant 0 : i32
    %c0_i32_1 = arith.constant 0 : i32
    return %c0_i32, %c0_i32_0 : i32, i32
  }
  func.func @transform_12(%arg0: i32) -> (i32, i32) {
    %c0_i32 = arith.constant 0 : i32
    %c0_i32_0 = arith.constant 0 : i32
    %c0_i32_1 = arith.constant 0 : i32
    return %c0_i32, %c0_i32_0 : i32, i32
  }
  func.func @transform_13(%arg0: i32) -> (i32, i32) {
    %c0_i32 = arith.constant 0 : i32
    %c0_i32_0 = arith.constant 0 : i32
    %c0_i32_1 = arith.constant 0 : i32
    return %c0_i32, %c0_i32_0 : i32, i32
  }
  func.func @transform_14(%arg0: i32) -> (i32, i32) {
    %c0_i32 = arith.constant 0 : i32
    %c0_i32_0 = arith.constant 0 : i32
    %c0_i32_1 = arith.constant 0 : i32
    return %c0_i32, %c0_i32_0 : i32, i32
  }
  func.func @transform_15(%arg0: i32) -> (i32, i32) {
    %c0_i32 = arith.constant 0 : i32
    %c0_i32_0 = arith.constant 0 : i32
    %c0_i32_1 = arith.constant 0 : i32
    return %c0_i32, %c0_i32_0 : i32, i32
  }
  func.func @transform_16(%arg0: i32) -> (i32, i32) {
    %c0_i32 = arith.constant 0 : i32
    %c0_i32_0 = arith.constant 0 : i32
    %c0_i32_1 = arith.constant 0 : i32
    return %c0_i32, %c0_i32_0 : i32, i32
  }
  func.func @transform_17(%arg0: i32) -> (i32, i32) {
    %c0_i32 = arith.constant 0 : i32
    %c0_i32_0 = arith.constant 0 : i32
    %c0_i32_1 = arith.constant 0 : i32
    return %c0_i32, %c0_i32_0 : i32, i32
  }
  func.func @transform_18(%arg0: i32) -> (i32, i32, i32) {
    %c0_i32 = arith.constant 0 : i32
    %c0_i32_0 = arith.constant 0 : i32
    %c0_i32_1 = arith.constant 0 : i32
    return %arg0, %c0_i32, %c0_i32_0 : i32, i32, i32
  }
  func.func @transform_19(%arg0: i32) -> (i32, i32) {
    %c0_i32 = arith.constant 0 : i32
    %c0_i32_0 = arith.constant 0 : i32
    %c0_i32_1 = arith.constant 0 : i32
    return %c0_i32, %c0_i32_0 : i32, i32
  }
}

</mosaic_0001>

<llo_original>
// kernel: tpu_custom_call.1
$region0: #{tpu_custom_call.1}
  #allocation0 [shape = 'u32[]', space=smem, size = 0x4, offset = 0x4, fixed_abs, tag = 'smem constant byte address 0x4 - core index']
  #allocation1 [shape = 'u32[144,128]{1,0:T(1,128)}', space=vmem, size = 0x12000, scoped, tag = 'internal scratch']
  #allocation2 [shape = 'f32[8,32]{1,0:T(8,128)}', space=vmem, size = 0x1000, scoped, tag = 'scratch operand']
  %s0 = inlined_call_operand.vmem [shape: f32[8,8,16], index: 0, kind: input, shape index: {}]
  %s1 = inlined_call_operand.hbm [shape: f32[8,8,8], index: 1, kind: input, shape index: {}]
  %s2 = inlined_call_operand.hbm [shape: f32[8,32], index: 2, kind: input, shape index: {}]
  %s3 = inlined_call_operand.hbm [shape: f32[16,128], index: 3, kind: input, shape index: {}]
  %s4 = inlined_call_operand.hbm [shape: f32[32,160], index: 4, kind: input, shape index: {}]
  %s5 = inlined_call_operand.hbm [shape: f32[8,128], index: 5, kind: input, shape index: {}]
  %s6 = inlined_call_operand.vmem [shape: f32[32,32], index: 6, kind: input, shape index: {}]
  %s7 = inlined_call_operand.vmem [shape: f32[32,16], index: 7, kind: input, shape index: {}]
  %s8 = inlined_call_operand.hbm [shape: f32[32,32], index: 8, kind: input, shape index: {}]
  %s9 = inlined_call_operand.vmem [shape: f32[32,16], index: 9, kind: input, shape index: {}]
  %s10 = inlined_call_operand.vmem [shape: f32[1,32], index: 10, kind: input, shape index: {}]
  %s11 = inlined_call_operand.vmem [shape: f32[1,32], index: 11, kind: input, shape index: {}]
  %s12 = inlined_call_operand.vmem [shape: f32[1,16], index: 12, kind: input, shape index: {}]
  %s13 = inlined_call_operand.vmem [shape: f32[1,32], index: 13, kind: input, shape index: {}]
  %s14 = inlined_call_operand.vmem [shape: f32[1,32], index: 14, kind: input, shape index: {}]
  %s15 = inlined_call_operand.vmem [shape: f32[1,16], index: 15, kind: input, shape index: {}]
  %s16 = inlined_call_operand.vmem [shape: f32[1,96], index: 16, kind: input, shape index: {}]
  %s17 = inlined_call_operand.vmem [shape: f32[1,96], index: 17, kind: input, shape index: {}]
  %s18 = inlined_call_operand.hbm [shape: f32[8,8,16], index: 18, kind: output, shape index: {0}]
  %s19 = inlined_call_operand.hbm [shape: f32[8,32], index: 19, kind: output, shape index: {1}]
  %20 = xla_tuple %s18, %s19
  %s21 = sld [smem:[#allocation0]]
  $region145: #{tpu_custom_call.1} parent=0
    _
  %s23 = ssub.s32 1, %s21
  %s24 = scalar_select 0, %s23, %s21
  $region1: #{tpu_custom_call.1} parent=0
    #allocation3 [shape = 'u8[8192]{0}', space=vmem, size = 0x2000, scoped, tag = 'input window, operand 1']
    #allocation4 [shape = 's32[2]{0}', space=sflag, size = 0x8, scoped, tag = 'scoped memory for tpu_custom_call.1']
    #allocation5 [shape = 's32[2]{0}', space=sflag, size = 0x8, scoped, tag = 'scoped memory for tpu_custom_call.1']
    #allocation6 [shape = 'u8[4096]{0}', space=vmem, size = 0x1000, scoped, tag = 'input window, operand 2, single buffered']
    #allocation7 [shape = 's32[1]{0}', space=sflag, size = 0x4, scoped, tag = 'scoped memory for tpu_custom_call.1']
    #allocation8 [shape = 'u8[8192]{0}', space=vmem, size = 0x2000, scoped, tag = 'input window, operand 3, single buffered']
    #allocation9 [shape = 'u8[32768]{0}', space=vmem, size = 0x8000, scoped, tag = 'input window, operand 4, single buffered']
    #allocation10 [shape = 's32[1]{0}', space=sflag, size = 0x4, scoped, tag = 'scoped memory for tpu_custom_call.1']
    #allocation11 [shape = 'u8[4096]{0}', space=vmem, size = 0x1000, scoped, tag = 'input window, operand 5, single buffered']
    #allocation12 [shape = 'u8[16384]{0}', space=vmem, size = 0x4000, scoped, tag = 'input window, operand 8, single buffered']
    #allocation13 [shape = 's32[1]{0}', space=sflag, size = 0x4, scoped, tag = 'scoped memory for tpu_custom_call.1']
    #allocation14 [shape = 'u8[8192]{0}', space=vmem, size = 0x2000, scoped, tag = 'output window, operand 0']
    #allocation15 [shape = 'u8[4096]{0}', space=vmem, size = 0x1000, scoped, tag = 'output window, operand 1, single buffered']
    #allocation16 [shape = 's32[1]{0}', space=sflag, size = 0x4, scoped, tag = 'scoped memory for tpu_custom_call.1']
    %25 = vsyncpa [#allocation4], 0
    %s26 = scalar_lea.sflag [#allocation4], 1
    %27 = vsyncpa %s26, 0
    %28 = vsyncpa [#allocation7], 0
    %29 = vsyncpa [#allocation10], 0
    %30 = vsyncpa [#allocation13], 0
    %31 = vsyncpa [#allocation5], 0
    %s32 = scalar_lea.sflag [#allocation5], 1
    %33 = vsyncpa %s32, 0
    %34 = vsyncpa [#allocation16], 0
    loop: start=0, step=1, limit=10
    $region2: #{tpu_custom_call.1} parent=1 // loop_pre_header
      _
    $region3: #{tpu_custom_call.1} parent=1 // loop_header
      %s36 = sphi 0, %s40
      %p37 = scmp.ge.s32.totalorder %s36, 10
      %s46 = sphi 0, %s48
      %s49 = sphi 0, %s46
      %s50 = sphi 0, %s49
      %s66 = sphi 0, %s50
      %s72 = sphi 0, %s74
      %s75 = sphi 0, %s72
      %s76 = sphi 0, %s75
      %s92 = sphi 0, %s76
      %s96 = sphi 0, %s96
      %s98 = sphi 0, %s96
      %s99 = sphi 0, %s98
      %s113 = sphi 0, %s99
      %s117 = sphi 0, %s117
      %s119 = sphi 0, %s117
      %s120 = sphi 0, %s119
      %s134 = sphi 0, %s120
      %s138 = sphi 0, %s138
      %s140 = sphi 0, %s138
      %s141 = sphi 0, %s140
      %s155 = sphi 0, %s141
      %s159 = sphi 0, %s159
      %s161 = sphi 0, %s159
      %s162 = sphi 0, %s161
      %s176 = sphi 0, %s162
      %s180 = sphi 0, %s180
      %s182 = sphi 0, %s180
      %s183 = sphi 0, %s182
      %s197 = sphi 0, %s183
      %s201 = sphi 0, %s201
      %s203 = sphi 0, %s201
      %s204 = sphi 0, %s203
      %s218 = sphi 0, %s204
      %s222 = sphi 0, %s222
      %s224 = sphi 0, %s222
      %s225 = sphi 0, %s224
      %s239 = sphi 0, %s225
      %s243 = sphi 0, %s243
      %s245 = sphi 0, %s243
      %s246 = sphi 0, %s245
      %s260 = sphi 0, %s246
      %s264 = sphi 0, %s264
      %s266 = sphi 0, %s264
      %s267 = sphi 0, %s266
      %s281 = sphi 0, %s267
      %s285 = sphi 0, %s285
      %s287 = sphi 0, %s285
      %s288 = sphi 0, %s287
      %s302 = sphi 0, %s288
      %s306 = sphi 0, %s306
      %s308 = sphi 0, %s306
      %s309 = sphi 0, %s308
      %s323 = sphi 0, %s309
      %s327 = sphi 0, %s327
      %s329 = sphi 0, %s327
      %s330 = sphi 0, %s329
      %s344 = sphi 0, %s330
      %s348 = sphi 0, %s348
      %s350 = sphi 0, %s348
      %s351 = sphi 0, %s350
      %s365 = sphi 0, %s351
      %s369 = sphi 0, %s369
      %s371 = sphi 0, %s369
      %s372 = sphi 0, %s371
      %s386 = sphi 0, %s372
      %s390 = sphi 0, %s390
      %s392 = sphi 0, %s390
      %s393 = sphi 0, %s392
      %s407 = sphi 0, %s393
      %s411 = sphi 0, %s411
      %s413 = sphi 0, %s411
      %s414 = sphi 0, %s413
      %s428 = sphi 0, %s414
      %s434 = sphi 0, %s436
      %s437 = sphi 0, %s434
      %s438 = sphi 0, %s437
      %s454 = sphi 0, %s438
      %s458 = sphi 0, %s458
      %s460 = sphi 0, %s458
      %s461 = sphi 0, %s460
      %s475 = sphi 0, %s461
    $region4: #{tpu_custom_call.1} parent=1 // loop_header_branch
      %39 = sbr.rel (%p37) target = $region8
    $region5: #{tpu_custom_call.1} parent=1 // loop_body
      %s41 = ssub.s32 %s36, 1
      %s42 = ssub.s32 %s36, 2
      %s43 = sadd.s32 %s36, 1
      %s44 = ssub.s32 %s36, %s43
      %p45 = scmp.eq.s32.totalorder %s44, 0
      %s47 = sadd.s32 %s46, 1
      %s48 = scalar_select %p45, %s46, %s47
      %p51 = pneg %p45
      %p52 = scmp.eq.s32.totalorder %s36, 7
      %p53 = por %p51, %p52
      %p54 = scmp.ne.s32.totalorder %s46, %s49
      %p55 = scmp.eq.s32.totalorder %s36, 0
      %p56 = por %p54, %p55
      %p57 = scmp.ne.s32.totalorder %s46, %s49
      %p58 = scmp.eq.s32.totalorder %s41, 7
      %p59 = por %p57, %p58
      %p60 = scmp.ne.s32.totalorder %s49, %s50
      %p61 = scmp.eq.s32.totalorder %s41, 0
      %p62 = por %p60, %p61
      %p63 = scmp.ne.s32.totalorder %s49, %s50
      %p64 = scmp.eq.s32.totalorder %s42, 7
      %p65 = por %p63, %p64
      %p67 = scmp.ne.s32.totalorder %s50, %s66
      %p68 = scmp.eq.s32.totalorder %s42, 0
      %p69 = por %p67, %p68
      %s70 = ssub.s32 %s36, %s43
      %p71 = scmp.eq.s32.totalorder %s70, 0
      %s73 = sadd.s32 %s72, 1
      %s74 = scalar_select %p71, %s72, %s73
      %p77 = pneg %p71
      %p78 = scmp.eq.s32.totalorder %s36, 7
      %p79 = por %p77, %p78
      %p80 = scmp.ne.s32.totalorder %s72, %s75
      %p81 = scmp.eq.s32.totalorder %s36, 0
      %p82 = por %p80, %p81
      %p83 = scmp.ne.s32.totalorder %s72, %s75
      %p84 = scmp.eq.s32.totalorder %s41, 7
      %p85 = por %p83, %p84
      %p86 = scmp.ne.s32.totalorder %s75, %s76
      %p87 = scmp.eq.s32.totalorder %s41, 0
      %p88 = por %p86, %p87
      %p89 = scmp.ne.s32.totalorder %s75, %s76
      %p90 = scmp.eq.s32.totalorder %s42, 7
      %p91 = por %p89, %p90
      %p93 = scmp.ne.s32.totalorder %s76, %s92
      %p94 = scmp.eq.s32.totalorder %s42, 0
      %p95 = por %p93, %p94
      %s97 = sadd.s32 %s96, 1
      %p100 = scmp.eq.s32.totalorder %s36, 7
      %p101 = scmp.ne.s32.totalorder %s96, %s98
      %p102 = scmp.eq.s32.totalorder %s36, 0
      %p103 = por %p101, %p102
      %p104 = scmp.ne.s32.totalorder %s96, %s98
      %p105 = scmp.eq.s32.totalorder %s41, 7
      %p106 = por %p104, %p105
      %p107 = scmp.ne.s32.totalorder %s98, %s99
      %p108 = scmp.eq.s32.totalorder %s41, 0
      %p109 = por %p107, %p108
      %p110 = scmp.ne.s32.totalorder %s98, %s99
      %p111 = scmp.eq.s32.totalorder %s42, 7
      %p112 = por %p110, %p111
      %p114 = scmp.ne.s32.totalorder %s99, %s113
      %p115 = scmp.eq.s32.totalorder %s42, 0
      %p116 = por %p114, %p115
      %s118 = sadd.s32 %s117, 1
      %p121 = scmp.eq.s32.totalorder %s36, 7
      %p122 = scmp.ne.s32.totalorder %s117, %s119
      %p123 = scmp.eq.s32.totalorder %s36, 0
      %p124 = por %p122, %p123
      %p125 = scmp.ne.s32.totalorder %s117, %s119
      %p126 = scmp.eq.s32.totalorder %s41, 7
      %p127 = por %p125, %p126
      %p128 = scmp.ne.s32.totalorder %s119, %s120
      %p129 = scmp.eq.s32.totalorder %s41, 0
      %p130 = por %p128, %p129
      %p131 = scmp.ne.s32.totalorder %s119, %s120
      %p132 = scmp.eq.s32.totalorder %s42, 7
      %p133 = por %p131, %p132
      %p135 = scmp.ne.s32.totalorder %s120, %s134
      %p136 = scmp.eq.s32.totalorder %s42, 0
      %p137 = por %p135, %p136
      %s139 = sadd.s32 %s138, 1
      %p142 = scmp.eq.s32.totalorder %s36, 7
      %p143 = scmp.ne.s32.totalorder %s138, %s140
      %p144 = scmp.eq.s32.totalorder %s36, 0
      %p145 = por %p143, %p144
      %p146 = scmp.ne.s32.totalorder %s138, %s140
      %p147 = scmp.eq.s32.totalorder %s41, 7
      %p148 = por %p146, %p147
      %p149 = scmp.ne.s32.totalorder %s140, %s141
      %p150 = scmp.eq.s32.totalorder %s41, 0
      %p151 = por %p149, %p150
      %p152 = scmp.ne.s32.totalorder %s140, %s141
      %p153 = scmp.eq.s32.totalorder %s42, 7
      %p154 = por %p152, %p153
      %p156 = scmp.ne.s32.totalorder %s141, %s155
      %p157 = scmp.eq.s32.totalorder %s42, 0
      %p158 = por %p156, %p157
      %s160 = sadd.s32 %s159, 1
      %p163 = scmp.eq.s32.totalorder %s36, 7
      %p164 = scmp.ne.s32.totalorder %s159, %s161
      %p165 = scmp.eq.s32.totalorder %s36, 0
      %p166 = por %p164, %p165
      %p167 = scmp.ne.s32.totalorder %s159, %s161
      %p168 = scmp.eq.s32.totalorder %s41, 7
      %p169 = por %p167, %p168
      %p170 = scmp.ne.s32.totalorder %s161, %s162
      %p171 = scmp.eq.s32.totalorder %s41, 0
      %p172 = por %p170, %p171
      %p173 = scmp.ne.s32.totalorder %s161, %s162
      %p174 = scmp.eq.s32.totalorder %s42, 7
      %p175 = por %p173, %p174
      %p177 = scmp.ne.s32.totalorder %s162, %s176
      %p178 = scmp.eq.s32.totalorder %s42, 0
      %p179 = por %p177, %p178
      %s181 = sadd.s32 %s180, 1
      %p184 = scmp.eq.s32.totalorder %s36, 7
      %p185 = scmp.ne.s32.totalorder %s180, %s182
      %p186 = scmp.eq.s32.totalorder %s36, 0
      %p187 = por %p185, %p186
      %p188 = scmp.ne.s32.totalorder %s180, %s182
      %p189 = scmp.eq.s32.totalorder %s41, 7
      %p190 = por %p188, %p189
      %p191 = scmp.ne.s32.totalorder %s182, %s183
      %p192 = scmp.eq.s32.totalorder %s41, 0
      %p193 = por %p191, %p192
      %p194 = scmp.ne.s32.totalorder %s182, %s183
      %p195 = scmp.eq.s32.totalorder %s42, 7
      %p196 = por %p194, %p195
      %p198 = scmp.ne.s32.totalorder %s183, %s197
      %p199 = scmp.eq.s32.totalorder %s42, 0
      %p200 = por %p198, %p199
      %s202 = sadd.s32 %s201, 1
      %p205 = scmp.eq.s32.totalorder %s36, 7
      %p206 = scmp.ne.s32.totalorder %s201, %s203
      %p207 = scmp.eq.s32.totalorder %s36, 0
      %p208 = por %p206, %p207
      %p209 = scmp.ne.s32.totalorder %s201, %s203
      %p210 = scmp.eq.s32.totalorder %s41, 7
      %p211 = por %p209, %p210
      %p212 = scmp.ne.s32.totalorder %s203, %s204
      %p213 = scmp.eq.s32.totalorder %s41, 0
      %p214 = por %p212, %p213
      %p215 = scmp.ne.s32.totalorder %s203, %s204
      %p216 = scmp.eq.s32.totalorder %s42, 7
      %p217 = por %p215, %p216
      %p219 = scmp.ne.s32.totalorder %s204, %s218
      %p220 = scmp.eq.s32.totalorder %s42, 0
      %p221 = por %p219, %p220
      %s223 = sadd.s32 %s222, 1
      %p226 = scmp.eq.s32.totalorder %s36, 7
      %p227 = scmp.ne.s32.totalorder %s222, %s224
      %p228 = scmp.eq.s32.totalorder %s36, 0
      %p229 = por %p227, %p228
      %p230 = scmp.ne.s32.totalorder %s222, %s224
      %p231 = scmp.eq.s32.totalorder %s41, 7
      %p232 = por %p230, %p231
      %p233 = scmp.ne.s32.totalorder %s224, %s225
      %p234 = scmp.eq.s32.totalorder %s41, 0
      %p235 = por %p233, %p234
      %p236 = scmp.ne.s32.totalorder %s224, %s225
      %p237 = scmp.eq.s32.totalorder %s42, 7
      %p238 = por %p236, %p237
      %p240 = scmp.ne.s32.totalorder %s225, %s239
      %p241 = scmp.eq.s32.totalorder %s42, 0
      %p242 = por %p240, %p241
      %s244 = sadd.s32 %s243, 1
      %p247 = scmp.eq.s32.totalorder %s36, 7
      %p248 = scmp.ne.s32.totalorder %s243, %s245
      %p249 = scmp.eq.s32.totalorder %s36, 0
      %p250 = por %p248, %p249
      %p251 = scmp.ne.s32.totalorder %s243, %s245
      %p252 = scmp.eq.s32.totalorder %s41, 7
      %p253 = por %p251, %p252
      %p254 = scmp.ne.s32.totalorder %s245, %s246
      %p255 = scmp.eq.s32.totalorder %s41, 0
      %p256 = por %p254, %p255
      %p257 = scmp.ne.s32.totalorder %s245, %s246
      %p258 = scmp.eq.s32.totalorder %s42, 7
      %p259 = por %p257, %p258
      %p261 = scmp.ne.s32.totalorder %s246, %s260
      %p262 = scmp.eq.s32.totalorder %s42, 0
      %p263 = por %p261, %p262
      %s265 = sadd.s32 %s264, 1
      %p268 = scmp.eq.s32.totalorder %s36, 7
      %p269 = scmp.ne.s32.totalorder %s264, %s266
      %p270 = scmp.eq.s32.totalorder %s36, 0
      %p271 = por %p269, %p270
      %p272 = scmp.ne.s32.totalorder %s264, %s266
      %p273 = scmp.eq.s32.totalorder %s41, 7
      %p274 = por %p272, %p273
      %p275 = scmp.ne.s32.totalorder %s266, %s267
      %p276 = scmp.eq.s32.totalorder %s41, 0
      %p277 = por %p275, %p276
      %p278 = scmp.ne.s32.totalorder %s266, %s267
      %p279 = scmp.eq.s32.totalorder %s42, 7
      %p280 = por %p278, %p279
      %p282 = scmp.ne.s32.totalorder %s267, %s281
      %p283 = scmp.eq.s32.totalorder %s42, 0
      %p284 = por %p282, %p283
      %s286 = sadd.s32 %s285, 1
      %p289 = scmp.eq.s32.totalorder %s36, 7
      %p290 = scmp.ne.s32.totalorder %s285, %s287
      %p291 = scmp.eq.s32.totalorder %s36, 0
      %p292 = por %p290, %p291
      %p293 = scmp.ne.s32.totalorder %s285, %s287
      %p294 = scmp.eq.s32.totalorder %s41, 7
      %p295 = por %p293, %p294
      %p296 = scmp.ne.s32.totalorder %s287, %s288
      %p297 = scmp.eq.s32.totalorder %s41, 0
      %p298 = por %p296, %p297
      %p299 = scmp.ne.s32.totalorder %s287, %s288
      %p300 = scmp.eq.s32.totalorder %s42, 7
      %p301 = por %p299, %p300
      %p303 = scmp.ne.s32.totalorder %s288, %s302
      %p304 = scmp.eq.s32.totalorder %s42, 0
      %p305 = por %p303, %p304
      %s307 = sadd.s32 %s306, 1
      %p310 = scmp.eq.s32.totalorder %s36, 7
      %p311 = scmp.ne.s32.totalorder %s306, %s308
      %p312 = scmp.eq.s32.totalorder %s36, 0
      %p313 = por %p311, %p312
      %p314 = scmp.ne.s32.totalorder %s306, %s308
      %p315 = scmp.eq.s32.totalorder %s41, 7
      %p316 = por %p314, %p315
      %p317 = scmp.ne.s32.totalorder %s308, %s309
      %p318 = scmp.eq.s32.totalorder %s41, 0
      %p319 = por %p317, %p318
      %p320 = scmp.ne.s32.totalorder %s308, %s309
      %p321 = scmp.eq.s32.totalorder %s42, 7
      %p322 = por %p320, %p321
      %p324 = scmp.ne.s32.totalorder %s309, %s323
      %p325 = scmp.eq.s32.totalorder %s42, 0
      %p326 = por %p324, %p325
      %s328 = sadd.s32 %s327, 1
      %p331 = scmp.eq.s32.totalorder %s36, 7
      %p332 = scmp.ne.s32.totalorder %s327, %s329
      %p333 = scmp.eq.s32.totalorder %s36, 0
      %p334 = por %p332, %p333
      %p335 = scmp.ne.s32.totalorder %s327, %s329
      %p336 = scmp.eq.s32.totalorder %s41, 7
      %p337 = por %p335, %p336
      %p338 = scmp.ne.s32.totalorder %s329, %s330
      %p339 = scmp.eq.s32.totalorder %s41, 0
      %p340 = por %p338, %p339
      %p341 = scmp.ne.s32.totalorder %s329, %s330
      %p342 = scmp.eq.s32.totalorder %s42, 7
      %p343 = por %p341, %p342
      %p345 = scmp.ne.s32.totalorder %s330, %s344
      %p346 = scmp.eq.s32.totalorder %s42, 0
      %p347 = por %p345, %p346
      %s349 = sadd.s32 %s348, 1
      %p352 = scmp.eq.s32.totalorder %s36, 7
      %p353 = scmp.ne.s32.totalorder %s348, %s350
      %p354 = scmp.eq.s32.totalorder %s36, 0
      %p355 = por %p353, %p354
      %p356 = scmp.ne.s32.totalorder %s348, %s350
      %p357 = scmp.eq.s32.totalorder %s41, 7
      %p358 = por %p356, %p357
      %p359 = scmp.ne.s32.totalorder %s350, %s351
      %p360 = scmp.eq.s32.totalorder %s41, 0
      %p361 = por %p359, %p360
      %p362 = scmp.ne.s32.totalorder %s350, %s351
      %p363 = scmp.eq.s32.totalorder %s42, 7
      %p364 = por %p362, %p363
      %p366 = scmp.ne.s32.totalorder %s351, %s365
      %p367 = scmp.eq.s32.totalorder %s42, 0
      %p368 = por %p366, %p367
      %s370 = sadd.s32 %s369, 1
      %p373 = scmp.eq.s32.totalorder %s36, 7
      %p374 = scmp.ne.s32.totalorder %s369, %s371
      %p375 = scmp.eq.s32.totalorder %s36, 0
      %p376 = por %p374, %p375
      %p377 = scmp.ne.s32.totalorder %s369, %s371
      %p378 = scmp.eq.s32.totalorder %s41, 7
      %p379 = por %p377, %p378
      %p380 = scmp.ne.s32.totalorder %s371, %s372
      %p381 = scmp.eq.s32.totalorder %s41, 0
      %p382 = por %p380, %p381
      %p383 = scmp.ne.s32.totalorder %s371, %s372
      %p384 = scmp.eq.s32.totalorder %s42, 7
      %p385 = por %p383, %p384
      %p387 = scmp.ne.s32.totalorder %s372, %s386
      %p388 = scmp.eq.s32.totalorder %s42, 0
      %p389 = por %p387, %p388
      %s391 = sadd.s32 %s390, 1
      %p394 = scmp.eq.s32.totalorder %s36, 7
      %p395 = scmp.ne.s32.totalorder %s390, %s392
      %p396 = scmp.eq.s32.totalorder %s36, 0
      %p397 = por %p395, %p396
      %p398 = scmp.ne.s32.totalorder %s390, %s392
      %p399 = scmp.eq.s32.totalorder %s41, 7
      %p400 = por %p398, %p399
      %p401 = scmp.ne.s32.totalorder %s392, %s393
      %p402 = scmp.eq.s32.totalorder %s41, 0
      %p403 = por %p401, %p402
      %p404 = scmp.ne.s32.totalorder %s392, %s393
      %p405 = scmp.eq.s32.totalorder %s42, 7
      %p406 = por %p404, %p405
      %p408 = scmp.ne.s32.totalorder %s393, %s407
      %p409 = scmp.eq.s32.totalorder %s42, 0
      %p410 = por %p408, %p409
      %s412 = sadd.s32 %s411, 1
      %p415 = scmp.eq.s32.totalorder %s36, 7
      %p416 = scmp.ne.s32.totalorder %s411, %s413
      %p417 = scmp.eq.s32.totalorder %s36, 0
      %p418 = por %p416, %p417
      %p419 = scmp.ne.s32.totalorder %s411, %s413
      %p420 = scmp.eq.s32.totalorder %s41, 7
      %p421 = por %p419, %p420
      %p422 = scmp.ne.s32.totalorder %s413, %s414
      %p423 = scmp.eq.s32.totalorder %s41, 0
      %p424 = por %p422, %p423
      %p425 = scmp.ne.s32.totalorder %s413, %s414
      %p426 = scmp.eq.s32.totalorder %s42, 7
      %p427 = por %p425, %p426
      %p429 = scmp.ne.s32.totalorder %s414, %s428
      %p430 = scmp.eq.s32.totalorder %s42, 0
      %p431 = por %p429, %p430
      %s432 = ssub.s32 %s36, %s43
      %p433 = scmp.eq.s32.totalorder %s432, 0
      %s435 = sadd.s32 %s434, 1
      %s436 = scalar_select %p433, %s434, %s435
      %p439 = pneg %p433
      %p440 = scmp.eq.s32.totalorder %s36, 7
      %p441 = por %p439, %p440
      %p442 = scmp.ne.s32.totalorder %s434, %s437
      %p443 = scmp.eq.s32.totalorder %s36, 0
      %p444 = por %p442, %p443
      %p445 = scmp.ne.s32.totalorder %s434, %s437
      %p446 = scmp.eq.s32.totalorder %s41, 7
      %p447 = por %p445, %p446
      %p448 = scmp.ne.s32.totalorder %s437, %s438
      %p449 = scmp.eq.s32.totalorder %s41, 0
      %p450 = por %p448, %p449
      %p451 = scmp.ne.s32.totalorder %s437, %s438
      %p452 = scmp.eq.s32.totalorder %s42, 7
      %p453 = por %p451, %p452
      %p455 = scmp.ne.s32.totalorder %s438, %s454
      %p456 = scmp.eq.s32.totalorder %s42, 0
      %p457 = por %p455, %p456
      %s459 = sadd.s32 %s458, 1
      %p462 = scmp.eq.s32.totalorder %s36, 7
      %p463 = scmp.ne.s32.totalorder %s458, %s460
      %p464 = scmp.eq.s32.totalorder %s36, 0
      %p465 = por %p463, %p464
      %p466 = scmp.ne.s32.totalorder %s458, %s460
      %p467 = scmp.eq.s32.totalorder %s41, 7
      %p468 = por %p466, %p467
      %p469 = scmp.ne.s32.totalorder %s460, %s461
      %p470 = scmp.eq.s32.totalorder %s41, 0
      %p471 = por %p469, %p470
      %p472 = scmp.ne.s32.totalorder %s460, %s461
      %p473 = scmp.eq.s32.totalorder %s42, 7
      %p474 = por %p472, %p473
      %p476 = scmp.ne.s32.totalorder %s461, %s475
      %p477 = scmp.eq.s32.totalorder %s42, 0
      %p478 = por %p476, %p477
      %p479 = scmp.le.s32.totalorder 1, %s36
      %p480 = scmp.lt.s32.totalorder %s36, 9
      %p481 = pnand %p479, %p480
      %p482 = pneg %p481
      // Predicated region
      $region9: #{tpu_custom_call.1} parent=5 // pred_check
        _
      $region10: #{tpu_custom_call.1} parent=5 // pred_check_branch
        %484 = sbr.rel (%p481) target = $region12
      $region11: #{tpu_custom_call.1} parent=5 // pred_region
        %s485 = ssub.s32 %s36, 1
        // Predicated region
        $region13: #{tpu_custom_call.1} parent=11 // pred_check
          %p486 = pneg %p109
        $region14: #{tpu_custom_call.1} parent=11 // pred_check_branch
          %488 = sbr.rel (%p486) target = $region16
        $region15: #{tpu_custom_call.1} parent=11 // pred_region
          %s490 = ssub.s32 128, 128
          %491 = vsyncadd [#allocation7], %s490
          %s493 = sshll.u32 [#allocation6], 4
          %s494 = int_to_ptr.vmem [resolvable:$true] %s493
          %496 = dma.hbm_to_vmem [thread:$0]  %s2, 128, %s494, [#allocation7]
        $region16: #{tpu_custom_call.1} parent=11 // pred_fallthru
          _
        // Predicated region
        $region17: #{tpu_custom_call.1} parent=11 // pred_check
          %p497 = pneg %p130
        $region18: #{tpu_custom_call.1} parent=11 // pred_check_branch
          %499 = sbr.rel (%p497) target = $region20
        $region19: #{tpu_custom_call.1} parent=11 // pred_region
          %s501 = ssub.s32 256, 256
          %502 = vsyncadd [#allocation7], %s501
          %s503 = sshll.u32 [#allocation8], 4
          %s504 = int_to_ptr.vmem [resolvable:$true] %s503
          %509 = dma.hbm_to_vmem [thread:$0]  %s3, 256, %s504, [#allocation7], 128, 128, 8
        $region20: #{tpu_custom_call.1} parent=11 // pred_fallthru
          _
        // Predicated region
        $region21: #{tpu_custom_call.1} parent=11 // pred_check
          %p510 = pneg %p151
        $region22: #{tpu_custom_call.1} parent=11 // pred_check_branch
          %512 = sbr.rel (%p510) target = $region24
        $region23: #{tpu_custom_call.1} parent=11 // pred_region
          %s514 = ssub.s32 1024, 1024
          %515 = vsyncadd [#allocation10], %s514
          %s516 = sshll.u32 [#allocation9], 4
          %s517 = int_to_ptr.vmem [resolvable:$true] %s516
          %522 = dma.hbm_to_vmem [thread:$0]  %s4, 1024, %s517, [#allocation10], 256, 256, 16
        $region24: #{tpu_custom_call.1} parent=11 // pred_fallthru
          _
        // Predicated region
        $region25: #{tpu_custom_call.1} parent=11 // pred_check
          %p523 = pneg %p172
        $region26: #{tpu_custom_call.1} parent=11 // pred_check_branch
          %525 = sbr.rel (%p523) target = $region28
        $region27: #{tpu_custom_call.1} parent=11 // pred_region
          %s527 = ssub.s32 128, 128
          %528 = vsyncadd [#allocation10], %s527
          %s530 = sshll.u32 [#allocation11], 4
          %s531 = int_to_ptr.vmem [resolvable:$true] %s530
          %533 = dma.hbm_to_vmem [thread:$0]  %s5, 128, %s531, [#allocation10]
        $region28: #{tpu_custom_call.1} parent=11 // pred_fallthru
          _
        // Predicated region
        $region29: #{tpu_custom_call.1} parent=11 // pred_check
          %p534 = pneg %p193
        $region30: #{tpu_custom_call.1} parent=11 // pred_check_branch
          %536 = sbr.rel (%p534) target = $region32
        $region31: #{tpu_custom_call.1} parent=11 // pred_region
          _
        $region32: #{tpu_custom_call.1} parent=11 // pred_fallthru
          _
        // Predicated region
        $region33: #{tpu_custom_call.1} parent=11 // pred_check
          %p537 = pneg %p214
        $region34: #{tpu_custom_call.1} parent=11 // pred_check_branch
          %539 = sbr.rel (%p537) target = $region36
        $region35: #{tpu_custom_call.1} parent=11 // pred_region
          _
        $region36: #{tpu_custom_call.1} parent=11 // pred_fallthru
          _
        // Predicated region
        $region37: #{tpu_custom_call.1} parent=11 // pred_check
          %p540 = pneg %p235
        $region38: #{tpu_custom_call.1} parent=11 // pred_check_branch
          %542 = sbr.rel (%p540) target = $region40
        $region39: #{tpu_custom_call.1} parent=11 // pred_region
          %s544 = ssub.s32 512, 512
          %545 = vsyncadd [#allocation13], %s544
          %s546 = sshll.u32 [#allocation12], 4
          %s547 = int_to_ptr.vmem [resolvable:$true] %s546
          %552 = dma.hbm_to_vmem [thread:$0]  %s8, 512, %s547, [#allocation13], 128, 128, 8
        $region40: #{tpu_custom_call.1} parent=11 // pred_fallthru
          _
        // Predicated region
        $region41: #{tpu_custom_call.1} parent=11 // pred_check
          %p553 = pneg %p256
        $region42: #{tpu_custom_call.1} parent=11 // pred_check_branch
          %555 = sbr.rel (%p553) target = $region44
        $region43: #{tpu_custom_call.1} parent=11 // pred_region
          _
        $region44: #{tpu_custom_call.1} parent=11 // pred_fallthru
          _
        // Predicated region
        $region45: #{tpu_custom_call.1} parent=11 // pred_check
          %p556 = pneg %p277
        $region46: #{tpu_custom_call.1} parent=11 // pred_check_branch
          %558 = sbr.rel (%p556) target = $region48
        $region47: #{tpu_custom_call.1} parent=11 // pred_region
          _
        $region48: #{tpu_custom_call.1} parent=11 // pred_fallthru
          _
        // Predicated region
        $region49: #{tpu_custom_call.1} parent=11 // pred_check
          %p559 = pneg %p298
        $region50: #{tpu_custom_call.1} parent=11 // pred_check_branch
          %561 = sbr.rel (%p559) target = $region52
        $region51: #{tpu_custom_call.1} parent=11 // pred_region
          _
        $region52: #{tpu_custom_call.1} parent=11 // pred_fallthru
          _
        // Predicated region
        $region53: #{tpu_custom_call.1} parent=11 // pred_check
          %p562 = pneg %p319
        $region54: #{tpu_custom_call.1} parent=11 // pred_check_branch
          %564 = sbr.rel (%p562) target = $region56
        $region55: #{tpu_custom_call.1} parent=11 // pred_region
          _
        $region56: #{tpu_custom_call.1} parent=11 // pred_fallthru
          _
        // Predicated region
        $region57: #{tpu_custom_call.1} parent=11 // pred_check
          %p565 = pneg %p340
        $region58: #{tpu_custom_call.1} parent=11 // pred_check_branch
          %567 = sbr.rel (%p565) target = $region60
        $region59: #{tpu_custom_call.1} parent=11 // pred_region
          _
        $region60: #{tpu_custom_call.1} parent=11 // pred_fallthru
          _
        // Predicated region
        $region61: #{tpu_custom_call.1} parent=11 // pred_check
          %p568 = pneg %p361
        $region62: #{tpu_custom_call.1} parent=11 // pred_check_branch
          %570 = sbr.rel (%p568) target = $region64
        $region63: #{tpu_custom_call.1} parent=11 // pred_region
          _
        $region64: #{tpu_custom_call.1} parent=11 // pred_fallthru
          _
        // Predicated region
        $region65: #{tpu_custom_call.1} parent=11 // pred_check
          %p571 = pneg %p382
        $region66: #{tpu_custom_call.1} parent=11 // pred_check_branch
          %573 = sbr.rel (%p571) target = $region68
        $region67: #{tpu_custom_call.1} parent=11 // pred_region
          _
        $region68: #{tpu_custom_call.1} parent=11 // pred_fallthru
          _
        // Predicated region
        $region69: #{tpu_custom_call.1} parent=11 // pred_check
          %p574 = pneg %p403
        $region70: #{tpu_custom_call.1} parent=11 // pred_check_branch
          %576 = sbr.rel (%p574) target = $region72
        $region71: #{tpu_custom_call.1} parent=11 // pred_region
          _
        $region72: #{tpu_custom_call.1} parent=11 // pred_fallthru
          _
        // Predicated region
        $region73: #{tpu_custom_call.1} parent=11 // pred_check
          %p577 = pneg %p424
        $region74: #{tpu_custom_call.1} parent=11 // pred_check_branch
          %579 = sbr.rel (%p577) target = $region76
        $region75: #{tpu_custom_call.1} parent=11 // pred_region
          _
        $region76: #{tpu_custom_call.1} parent=11 // pred_fallthru
          _
      $region12: #{tpu_custom_call.1} parent=5 // pred_fallthru
        _
      %p580 = scmp.lt.s32.totalorder %s36, 8
      // Predicated region
      $region77: #{tpu_custom_call.1} parent=5 // pred_check
        %p581 = pneg %p580
      $region78: #{tpu_custom_call.1} parent=5 // pred_check_branch
        %583 = sbr.rel (%p581) target = $region80
      $region79: #{tpu_custom_call.1} parent=5 // pred_region
        // Predicated region
        $region81: #{tpu_custom_call.1} parent=79 // pred_check
          %p584 = pneg %p56
        $region82: #{tpu_custom_call.1} parent=79 // pred_check_branch
          %586 = sbr.rel (%p584) target = $region84
        $region83: #{tpu_custom_call.1} parent=79 // pred_region
          %p587 = scmp.lt.s32.totalorder %s36, 7
          %s588 = scalar_select %p587, %s36, 7
          %s589 = smul.addr %s588, 8
          %s590 = scalar_lea.vmem %s0, %s589
        $region84: #{tpu_custom_call.1} parent=79 // pred_fallthru
          _
        // Predicated region
        $region85: #{tpu_custom_call.1} parent=79 // pred_check
          %p591 = pneg %p82
        $region86: #{tpu_custom_call.1} parent=79 // pred_check_branch
          %593 = sbr.rel (%p591) target = $region88
        $region87: #{tpu_custom_call.1} parent=79 // pred_region
          %s594 = sand.u32 %s72, 1
          %s595 = scalar_lea.sflag [#allocation4], %s594
          %s596 = sand.u32 %s72, 1
          %s597 = smul.addr %s596, 8
          %s598 = scalar_lea.vmem [#allocation3], %s597
          %s600 = ssub.s32 128, 128
          %601 = vsyncadd %s595, %s600
          %s602 = smul.addr %s36, 128
          %s603 = scalar_lea.hbm %s1, %s602
          %s605 = sshll.u32 %s598, 4
          %s606 = int_to_ptr.vmem [resolvable:$true] %s605
          %608 = dma.hbm_to_vmem [thread:$0]  %s603, 128, %s606, %s595
        $region88: #{tpu_custom_call.1} parent=79 // pred_fallthru
          _
      $region80: #{tpu_custom_call.1} parent=5 // pred_fallthru
        _
      %p609 = scmp.le.s32.totalorder 1, %s36
      %p610 = scmp.lt.s32.totalorder %s36, 9
      %p611 = pnand %p609, %p610
      %p612 = pneg %p611
      // Predicated region
      $region89: #{tpu_custom_call.1} parent=5 // pred_check
        _
      $region90: #{tpu_custom_call.1} parent=5 // pred_check_branch
        %614 = sbr.rel (%p611) target = $region92
      $region91: #{tpu_custom_call.1} parent=5 // pred_region
        %s615 = ssub.s32 %s36, 1
        %s616 = sand.u32 %s75, 1
        %s617 = scalar_lea.sflag [#allocation4], %s616
        %s618 = sand.u32 %s75, 1
        %s619 = smul.addr %s618, 8
        %s620 = scalar_lea.vmem [#allocation3], %s619
        // Predicated region
        $region93: #{tpu_custom_call.1} parent=91 // pred_check
          %p621 = pneg %p88
        $region94: #{tpu_custom_call.1} parent=91 // pred_check_branch
          %623 = sbr.rel (%p621) target = $region96
        $region95: #{tpu_custom_call.1} parent=91 // pred_region
          %624 = dma.done %s617, 128
        $region96: #{tpu_custom_call.1} parent=91 // pred_fallthru
          _
        // Predicated region
        $region97: #{tpu_custom_call.1} parent=91 // pred_check
          %p625 = pneg %p109
        $region98: #{tpu_custom_call.1} parent=91 // pred_check_branch
          %627 = sbr.rel (%p625) target = $region100
        $region99: #{tpu_custom_call.1} parent=91 // pred_region
          %628 = dma.done [#allocation7], 128
        $region100: #{tpu_custom_call.1} parent=91 // pred_fallthru
          _
        // Predicated region
        $region101: #{tpu_custom_call.1} parent=91 // pred_check
          %p629 = pneg %p130
        $region102: #{tpu_custom_call.1} parent=91 // pred_check_branch
          %631 = sbr.rel (%p629) target = $region104
        $region103: #{tpu_custom_call.1} parent=91 // pred_region
          %632 = dma.done [#allocation7], 256
        $region104: #{tpu_custom_call.1} parent=91 // pred_fallthru
          _
        // Predicated region
        $region105: #{tpu_custom_call.1} parent=91 // pred_check
          %p633 = pneg %p151
        $region106: #{tpu_custom_call.1} parent=91 // pred_check_branch
          %635 = sbr.rel (%p633) target = $region108
        $region107: #{tpu_custom_call.1} parent=91 // pred_region
          %636 = dma.done [#allocation10], 1024
        $region108: #{tpu_custom_call.1} parent=91 // pred_fallthru
          _
        // Predicated region
        $region109: #{tpu_custom_call.1} parent=91 // pred_check
          %p637 = pneg %p172
        $region110: #{tpu_custom_call.1} parent=91 // pred_check_branch
          %639 = sbr.rel (%p637) target = $region112
        $region111: #{tpu_custom_call.1} parent=91 // pred_region
          %640 = dma.done [#allocation10], 128
        $region112: #{tpu_custom_call.1} parent=91 // pred_fallthru
          _
        // Predicated region
        $region113: #{tpu_custom_call.1} parent=91 // pred_check
          %p641 = pneg %p235
        $region114: #{tpu_custom_call.1} parent=91 // pred_check_branch
          %643 = sbr.rel (%p641) target = $region116
        $region115: #{tpu_custom_call.1} parent=91 // pred_region
          %644 = dma.done [#allocation13], 512
        $region116: #{tpu_custom_call.1} parent=91 // pred_fallthru
          _
        %p645 = scmp.lt.s32.totalorder %s41, 7
        %s646 = scalar_select %p645, %s41, 7
        %s647 = smul.addr %s646, 8
        %s648 = scalar_lea.vmem %s0, %s647
        %p649 = pneg %p62
        %p650 = pneg %p59
        %s651 = sand.u32 %s75, 1
        %s652 = scalar_lea.sflag [#allocation4], %s651
        %s653 = sand.u32 %s75, 1
        %s654 = smul.addr %s653, 8
        %s655 = scalar_lea.vmem [#allocation3], %s654
        %p656 = pneg %p88
        %p657 = pneg %p85
        %p658 = pneg %p109
        %p659 = pneg %p106
        %p660 = pneg %p130
        %p661 = pneg %p127
        %p662 = pneg %p151
        %p663 = pneg %p148
        %p664 = pneg %p172
        %p665 = pneg %p169
        %p666 = pneg %p193
        %p667 = pneg %p190
        %p668 = pneg %p214
        %p669 = pneg %p211
        %p670 = pneg %p235
        %p671 = pneg %p232
        %p672 = pneg %p256
        %p673 = pneg %p253
        %p674 = pneg %p277
        %p675 = pneg %p274
        %p676 = pneg %p298
        %p677 = pneg %p295
        %p678 = pneg %p319
        %p679 = pneg %p316
        %p680 = pneg %p340
        %p681 = pneg %p337
        %p682 = pneg %p361
        %p683 = pneg %p358
        %p684 = pneg %p382
        %p685 = pneg %p379
        %p686 = pneg %p403
        %p687 = pneg %p400
        %p688 = pneg %p424
        %p689 = pneg %p421
        %p690 = pneg %p450
        %p691 = pneg %p447
        %s692 = sand.u32 %s437, 1
        %s693 = scalar_lea.sflag [#allocation5], %s692
        %s694 = sand.u32 %s437, 1
        %s695 = smul.addr %s694, 8
        %s696 = scalar_lea.vmem [#allocation14], %s695
        %p697 = pneg %p471
        %p698 = pneg %p468
        %p699 = scmp.lt.s32.totalorder %s41, 7
        %s700 = scalar_select %p699, %s41, 7
        %s701 = smul.addr %s700, 8
        %s702 = scalar_lea.vmem %s0, %s701
        %p703 = scmp.eq.s32.totalorder %s41, 0
        // Predicated region
        $region117: #{tpu_custom_call.1} parent=91 // pred_check
          %p704 = pneg %p703
        $region118: #{tpu_custom_call.1} parent=91 // pred_check_branch
          %706 = sbr.rel (%p704) target = $region120
        $region119: #{tpu_custom_call.1} parent=91 // pred_region
          %v707 = vld [vmem:[#allocation6] sm:$0xff]
          %vm708 = vcmask 261120
          %709 = vst.msk [vmem:[#allocation2] sm:$0xff] %vm708, %v707
        $region120: #{tpu_custom_call.1} parent=91 // pred_fallthru
          _
        %v710 = vld [vmem:[%s702] sm:$0xff]
        %v711 = vld [vmem:[%s620] sm:$0xff]
        %v712 = vld [vmem:[#allocation2] sm:$0xff]
        %v713 = vld [vmem:[#allocation8] sm:$0xff]
        %v714 = vld [vmem:[#allocation8 + $0x8] sm:$0xff]
        %vm715 = vcmask 130048
        %v717 = vsel %vm715, %v710, 0
        %719 = vmatprep.subr.mxu0 0.0
        %720 = vmatpush1.msra.mxu0 0.0
        %721 = vmatprep.subr.mxu0 0.0
        %722 = vmatpush1.msra.mxu0 0.0
        %723 = vmatprep.subr.mxu0 0.0
        %724 = vmatpush1.msra.mxu0 0.0
        %725 = vmatprep.subr.mxu0 0.0
        %726 = vmatpush1.msra.mxu0 0.0
        %727 = vmatprep.subr.mxu0 0.0
        %728 = vmatpush1.msra.mxu0 0.0
        %729 = vmatprep.subr.mxu0 0.0
        %730 = vmatpush1.msra.mxu0 0.0
        %731 = vmatprep.subr.mxu0 0.0
        %732 = vmatpush1.msra.mxu0 0.0
        %733 = vmatprep.subr.mxu0 0.0
        %734 = vmatpush1.msra.mxu0 0.0
        %735 = vmatprep.subr.mxu0 0.0
        %736 = vmatpush1.msra.mxu0 0.0
        %737 = vmatprep.subr.mxu0 0.0
        %738 = vmatpush1.msra.mxu0 0.0
        %739 = vmatprep.subr.mxu0 0.0
        %740 = vmatpush1.msra.mxu0 0.0
        %741 = vmatprep.subr.mxu0 0.0
        %742 = vmatpush1.msra.mxu0 0.0
        %743 = vmatprep.subr.mxu0 0.0
        %744 = vmatpush1.msra.mxu0 0.0
        %745 = vmatprep.subr.mxu0 0.0
        %746 = vmatpush1.msra.mxu0 0.0
        %747 = vmatprep.subr.mxu0 0.0
        %748 = vmatpush1.msra.mxu0 %v714
        %749 = vmatprep.subr.mxu0 0.0
        %750 = vmatpush1.msra.mxu0 %v713
        %751 = vmatprep.subr.mxu0 0.0
        %752 = vmatpush2.msra.mxu0 0.0
        %753 = vmatprep.subr.mxu0 0.0
        %754 = vmatpush2.msra.mxu0 0.0
        %755 = vmatprep.subr.mxu0 0.0
        %756 = vmatpush2.msra.mxu0 0.0
        %757 = vmatprep.subr.mxu0 0.0
        %758 = vmatpush2.msra.mxu0 0.0
        %759 = vmatprep.subr.mxu0 0.0
        %760 = vmatpush2.msra.mxu0 0.0
        %761 = vmatprep.subr.mxu0 0.0
        %762 = vmatpush2.msra.mxu0 0.0
        %763 = vmatprep.subr.mxu0 0.0
        %764 = vmatpush2.msra.mxu0 0.0
        %765 = vmatprep.subr.mxu0 0.0
        %766 = vmatpush2.msra.mxu0 0.0
        %767 = vmatprep.subr.mxu0 0.0
        %768 = vmatpush2.msra.mxu0 0.0
        %769 = vmatprep.subr.mxu0 0.0
        %770 = vmatpush2.msra.mxu0 0.0
        %771 = vmatprep.subr.mxu0 0.0
        %772 = vmatpush2.msra.mxu0 0.0
        %773 = vmatprep.subr.mxu0 0.0
        %774 = vmatpush2.msra.mxu0 0.0
        %775 = vmatprep.subr.mxu0 0.0
        %776 = vmatpush2.msra.mxu0 0.0
        %777 = vmatprep.subr.mxu0 0.0
        %778 = vmatpush2.msra.mxu0 0.0
        %779 = vmatprep.subr.mxu0 0.0
        %780 = vmatpush2.msra.mxu0 0.0
        %781 = vmatprep.subr.mxu0 0.0
        %782 = vmatpush2.msra.mxu0 0.0
        %783 = vmatprep.mubr.f32.mxu0 0.0
        %784 = vmatmul.mubr.f32.gmra.mxu0 %v717
        %v785 = vpop.f32.mrf.mxu0
        %v786 = vadd.f32 0.0, %v785
        %v787 = vpop.f32.mrf.mxu0
        %788 = vdwg.mxu0
        %v789 = vld [vmem:[#allocation9] sm:$0xff]
        %v790 = vld [vmem:[#allocation9 + $0x8] sm:$0xff]
        %v791 = vld [vmem:[#allocation9 + $0x10] sm:$0xff]
        %v792 = vld [vmem:[#allocation9 + $0x18] sm:$0xff]
        %v793 = vld [vmem:[#allocation9 + $0x20] sm:$0xff]
        %v794 = vld [vmem:[#allocation9 + $0x28] sm:$0xff]
        %v795 = vld [vmem:[#allocation9 + $0x30] sm:$0xff]
        %v796 = vld [vmem:[#allocation9 + $0x38] sm:$0xff]
        %vm797 = vcmask 261120
        %v799 = vsel %vm797, %v712, 0
        %801 = vmatprep.subr.mxu0 0.0
        %802 = vmatpush1.msra.mxu0 0.0
        %803 = vmatprep.subr.mxu0 0.0
        %804 = vmatpush1.msra.mxu0 0.0
        %805 = vmatprep.subr.mxu0 0.0
        %806 = vmatpush1.msra.mxu0 0.0
        %807 = vmatprep.subr.mxu0 0.0
        %808 = vmatpush1.msra.mxu0 0.0
        %809 = vmatprep.subr.mxu0 0.0
        %810 = vmatpush1.msra.mxu0 0.0
        %811 = vmatprep.subr.mxu0 0.0
        %812 = vmatpush1.msra.mxu0 0.0
        %813 = vmatprep.subr.mxu0 0.0
        %814 = vmatpush1.msra.mxu0 0.0
        %815 = vmatprep.subr.mxu0 0.0
        %816 = vmatpush1.msra.mxu0 0.0
        %817 = vmatprep.subr.mxu0 0.0
        %818 = vmatpush1.msra.mxu0 0.0
        %819 = vmatprep.subr.mxu0 0.0
        %820 = vmatpush1.msra.mxu0 0.0
        %821 = vmatprep.subr.mxu0 0.0
        %822 = vmatpush1.msra.mxu0 0.0
        %823 = vmatprep.subr.mxu0 0.0
        %824 = vmatpush1.msra.mxu0 0.0
        %825 = vmatprep.subr.mxu0 %v796
        %826 = vmatpush1.msra.mxu0 %v795
        %827 = vmatprep.subr.mxu0 %v794
        %828 = vmatpush1.msra.mxu0 %v793
        %829 = vmatprep.subr.mxu0 %v792
        %830 = vmatpush1.msra.mxu0 %v791
        %831 = vmatprep.subr.mxu0 %v790
        %832 = vmatpush1.msra.mxu0 %v789
        %833 = vmatprep.subr.mxu0 0.0
        %834 = vmatpush2.msra.mxu0 0.0
        %835 = vmatprep.subr.mxu0 0.0
        %836 = vmatpush2.msra.mxu0 0.0
        %837 = vmatprep.subr.mxu0 0.0
        %838 = vmatpush2.msra.mxu0 0.0
        %839 = vmatprep.subr.mxu0 0.0
        %840 = vmatpush2.msra.mxu0 0.0
        %841 = vmatprep.subr.mxu0 0.0
        %842 = vmatpush2.msra.mxu0 0.0
        %843 = vmatprep.subr.mxu0 0.0
        %844 = vmatpush2.msra.mxu0 0.0
        %845 = vmatprep.subr.mxu0 0.0
        %846 = vmatpush2.msra.mxu0 0.0
        %847 = vmatprep.subr.mxu0 0.0
        %848 = vmatpush2.msra.mxu0 0.0
        %849 = vmatprep.subr.mxu0 0.0
        %850 = vmatpush2.msra.mxu0 0.0
        %851 = vmatprep.subr.mxu0 0.0
        %852 = vmatpush2.msra.mxu0 0.0
        %853 = vmatprep.subr.mxu0 0.0
        %854 = vmatpush2.msra.mxu0 0.0
        %855 = vmatprep.subr.mxu0 0.0
        %856 = vmatpush2.msra.mxu0 0.0
        %857 = vmatprep.subr.mxu0 0.0
        %858 = vmatpush2.msra.mxu0 0.0
        %859 = vmatprep.subr.mxu0 0.0
        %860 = vmatpush2.msra.mxu0 0.0
        %861 = vmatprep.subr.mxu0 0.0
        %862 = vmatpush2.msra.mxu0 0.0
        %863 = vmatprep.subr.mxu0 0.0
        %864 = vmatpush2.msra.mxu0 0.0
        %865 = vmatprep.mubr.f32.mxu0 0.0
        %866 = vmatmul.mubr.f32.gmra.mxu0 %v799
        %v867 = vpop.f32.mrf.mxu0
        %v868 = vadd.f32 0.0, %v867
        %v869 = vpop.f32.mrf.mxu0
        %v870 = vadd.f32 0.0, %v869
        %871 = vdwg.mxu0
        %v872 = vadd.f32 %v786, %v868
        %v873 = vld [vmem:[%s10] sm:$0x1]
        %v875 = vlaneseq
        %v876 = vshrl.u32 %v875, 7
        %v877 = vsub.s32 0, %v876
        %v878 = vrot.slane %v873, %v877
        %v880 = vadd.f32 %v872, %v878
        %v881 = vmax.f32 %v880, 0.0
        %v882 = vld [vmem:[%s6] sm:$0xff]
        %v883 = vld [vmem:[%s6 + $0x8] sm:$0xff]
        %v884 = vld [vmem:[%s6 + $0x10] sm:$0xff]
        %v885 = vld [vmem:[%s6 + $0x18] sm:$0xff]
        %v886 = vld [vmem:[%s11] sm:$0x1]
        %v888 = vlaneseq
        %v889 = vshrl.u32 %v888, 7
        %v890 = vsub.s32 0, %v889
        %v891 = vrot.slane %v886, %v890
        %v894 = vsel %vm797, %v881, 0
        %896 = vmatprep.subr.mxu0 0.0
        %897 = vmatpush1.msra.mxu0 0.0
        %898 = vmatprep.subr.mxu0 0.0
        %899 = vmatpush1.msra.mxu0 0.0
        %900 = vmatprep.subr.mxu0 0.0
        %901 = vmatpush1.msra.mxu0 0.0
        %902 = vmatprep.subr.mxu0 0.0
        %903 = vmatpush1.msra.mxu0 0.0
        %904 = vmatprep.subr.mxu0 0.0
        %905 = vmatpush1.msra.mxu0 0.0
        %906 = vmatprep.subr.mxu0 0.0
        %907 = vmatpush1.msra.mxu0 0.0
        %908 = vmatprep.subr.mxu0 0.0
        %909 = vmatpush1.msra.mxu0 0.0
        %910 = vmatprep.subr.mxu0 0.0
        %911 = vmatpush1.msra.mxu0 0.0
        %912 = vmatprep.subr.mxu0 0.0
        %913 = vmatpush1.msra.mxu0 0.0
        %914 = vmatprep.subr.mxu0 0.0
        %915 = vmatpush1.msra.mxu0 0.0
        %916 = vmatprep.subr.mxu0 0.0
        %917 = vmatpush1.msra.mxu0 0.0
        %918 = vmatprep.subr.mxu0 0.0
        %919 = vmatpush1.msra.mxu0 0.0
        %920 = vmatprep.subr.mxu0 0.0
        %921 = vmatpush1.msra.mxu0 %v885
        %922 = vmatprep.subr.mxu0 0.0
        %923 = vmatpush1.msra.mxu0 %v884
        %924 = vmatprep.subr.mxu0 0.0
        %925 = vmatpush1.msra.mxu0 %v883
        %926 = vmatprep.subr.mxu0 0.0
        %927 = vmatpush1.msra.mxu0 %v882
        %928 = vmatprep.subr.mxu0 0.0
        %929 = vmatpush2.msra.mxu0 0.0
        %930 = vmatprep.subr.mxu0 0.0
        %931 = vmatpush2.msra.mxu0 0.0
        %932 = vmatprep.subr.mxu0 0.0
        %933 = vmatpush2.msra.mxu0 0.0
        %934 = vmatprep.subr.mxu0 0.0
        %935 = vmatpush2.msra.mxu0 0.0
        %936 = vmatprep.subr.mxu0 0.0
        %937 = vmatpush2.msra.mxu0 0.0
        %938 = vmatprep.subr.mxu0 0.0
        %939 = vmatpush2.msra.mxu0 0.0
        %940 = vmatprep.subr.mxu0 0.0
        %941 = vmatpush2.msra.mxu0 0.0
        %942 = vmatprep.subr.mxu0 0.0
        %943 = vmatpush2.msra.mxu0 0.0
        %944 = vmatprep.subr.mxu0 0.0
        %945 = vmatpush2.msra.mxu0 0.0
        %946 = vmatprep.subr.mxu0 0.0
        %947 = vmatpush2.msra.mxu0 0.0
        %948 = vmatprep.subr.mxu0 0.0
        %949 = vmatpush2.msra.mxu0 0.0
        %950 = vmatprep.subr.mxu0 0.0
        %951 = vmatpush2.msra.mxu0 0.0
        %952 = vmatprep.subr.mxu0 0.0
        %953 = vmatpush2.msra.mxu0 0.0
        %954 = vmatprep.subr.mxu0 0.0
        %955 = vmatpush2.msra.mxu0 0.0
        %956 = vmatprep.subr.mxu0 0.0
        %957 = vmatpush2.msra.mxu0 0.0
        %958 = vmatprep.subr.mxu0 0.0
        %959 = vmatpush2.msra.mxu0 0.0
        %960 = vmatprep.mubr.f32.mxu0 0.0
        %961 = vmatmul.mubr.f32.gmra.mxu0 %v894
        %v962 = vpop.f32.mrf.mxu0
        %v963 = vadd.f32 %v891, %v962
        %v964 = vpop.f32.mrf.mxu0
        %965 = vdwg.mxu0
        %v966 = vmax.f32 %v963, 0.0
        %v967 = vld [vmem:[%s7] sm:$0xff]
        %v968 = vld [vmem:[%s7 + $0x8] sm:$0xff]
        %v969 = vld [vmem:[%s7 + $0x10] sm:$0xff]
        %v970 = vld [vmem:[%s7 + $0x18] sm:$0xff]
        %v971 = vld [vmem:[%s12] sm:$0x1]
        %v973 = vlaneseq
        %v974 = vshrl.u32 %v973, 7
        %v975 = vsub.s32 0, %v974
        %v976 = vrot.slane %v971, %v975
        %v979 = vsel %vm797, %v966, 0
        %981 = vmatprep.subr.mxu0 0.0
        %982 = vmatpush1.msra.mxu0 0.0
        %983 = vmatprep.subr.mxu0 0.0
        %984 = vmatpush1.msra.mxu0 0.0
        %985 = vmatprep.subr.mxu0 0.0
        %986 = vmatpush1.msra.mxu0 0.0
        %987 = vmatprep.subr.mxu0 0.0
        %988 = vmatpush1.msra.mxu0 0.0
        %989 = vmatprep.subr.mxu0 0.0
        %990 = vmatpush1.msra.mxu0 0.0
        %991 = vmatprep.subr.mxu0 0.0
        %992 = vmatpush1.msra.mxu0 0.0
        %993 = vmatprep.subr.mxu0 0.0
        %994 = vmatpush1.msra.mxu0 0.0
        %995 = vmatprep.subr.mxu0 0.0
        %996 = vmatpush1.msra.mxu0 0.0
        %997 = vmatprep.subr.mxu0 0.0
        %998 = vmatpush1.msra.mxu0 0.0
        %999 = vmatprep.subr.mxu0 0.0
        %1000 = vmatpush1.msra.mxu0 0.0
        %1001 = vmatprep.subr.mxu0 0.0
        %1002 = vmatpush1.msra.mxu0 0.0
        %1003 = vmatprep.subr.mxu0 0.0
        %1004 = vmatpush1.msra.mxu0 0.0
        %1005 = vmatprep.subr.mxu0 0.0
        %1006 = vmatpush1.msra.mxu0 %v970
        %1007 = vmatprep.subr.mxu0 0.0
        %1008 = vmatpush1.msra.mxu0 %v969
        %1009 = vmatprep.subr.mxu0 0.0
        %1010 = vmatpush1.msra.mxu0 %v968
        %1011 = vmatprep.subr.mxu0 0.0
        %1012 = vmatpush1.msra.mxu0 %v967
        %1013 = vmatprep.subr.mxu0 0.0
        %1014 = vmatpush2.msra.mxu0 0.0
        %1015 = vmatprep.subr.mxu0 0.0
        %1016 = vmatpush2.msra.mxu0 0.0
        %1017 = vmatprep.subr.mxu0 0.0
        %1018 = vmatpush2.msra.mxu0 0.0
        %1019 = vmatprep.subr.mxu0 0.0
        %1020 = vmatpush2.msra.mxu0 0.0
        %1021 = vmatprep.subr.mxu0 0.0
        %1022 = vmatpush2.msra.mxu0 0.0
        %1023 = vmatprep.subr.mxu0 0.0
        %1024 = vmatpush2.msra.mxu0 0.0
        %1025 = vmatprep.subr.mxu0 0.0
        %1026 = vmatpush2.msra.mxu0 0.0
        %1027 = vmatprep.subr.mxu0 0.0
        %1028 = vmatpush2.msra.mxu0 0.0
        %1029 = vmatprep.subr.mxu0 0.0
        %1030 = vmatpush2.msra.mxu0 0.0
        %1031 = vmatprep.subr.mxu0 0.0
        %1032 = vmatpush2.msra.mxu0 0.0
        %1033 = vmatprep.subr.mxu0 0.0
        %1034 = vmatpush2.msra.mxu0 0.0
        %1035 = vmatprep.subr.mxu0 0.0
        %1036 = vmatpush2.msra.mxu0 0.0
        %1037 = vmatprep.subr.mxu0 0.0
        %1038 = vmatpush2.msra.mxu0 0.0
        %1039 = vmatprep.subr.mxu0 0.0
        %1040 = vmatpush2.msra.mxu0 0.0
        %1041 = vmatprep.subr.mxu0 0.0
        %1042 = vmatpush2.msra.mxu0 0.0
        %1043 = vmatprep.subr.mxu0 0.0
        %1044 = vmatpush2.msra.mxu0 0.0
        %1045 = vmatprep.mubr.f32.mxu0 0.0
        %1046 = vmatmul.mubr.f32.gmra.mxu0 %v979
        %v1047 = vpop.f32.mrf.mxu0
        %v1048 = vadd.f32 %v976, %v1047
        %v1049 = vpop.f32.mrf.mxu0
        %1050 = vdwg.mxu0
        %v1051 = vmax.f32 %v1048, 0.0
        %v1052 = vand.u32 2147483647, %v1048
        %v1053 = vsub.f32 0.0, %v1052
        %v1054 = vmul.f32 %v1053, 1.442695
        %v1055 = vpow.pop %v1054
        %v1056 = vadd.f32 %v1055, 1.0
        %v1057 = vlog2.pop %v1056
        %v1058 = vmul.f32 %v1057, 0.6931472
        %v1059 = vmul.f32 -0.5, %v1055
        %v1060 = vadd.f32 %v1059, 1.0
        %v1061 = vmul.f32 %v1060, %v1055
        %v1062 = vand.u32 2147483647, %v1055
        %vm1063 = vcmp.lt.f32.partialorder %v1062, 0.0004427343
        %v1064 = vsel %vm1063, %v1061, %v1058
        %v1065 = vadd.f32 %v1051, %v1064
        %1067 = vrot.lane.b32.xlu0 %v1065, 120
        %v1068 = vpop.permute.xlu0 %1067
        %v1070 = vmul.f32 %v711, %v1068
        %v1071 = vadd.f32 %v1070, %v1048
        %v1072 = vld [vmem:[#allocation11] sm:$0xff]
        %vm1073 = vcmask 64512
        %v1075 = vsel %vm1073, %v1071, 0
        %1077 = vmatprep.subr.mxu0 0.0
        %1078 = vmatpush1.msra.mxu0 0.0
        %1079 = vmatprep.subr.mxu0 0.0
        %1080 = vmatpush1.msra.mxu0 0.0
        %1081 = vmatprep.subr.mxu0 0.0
        %1082 = vmatpush1.msra.mxu0 0.0
        %1083 = vmatprep.subr.mxu0 0.0
        %1084 = vmatpush1.msra.mxu0 0.0
        %1085 = vmatprep.subr.mxu0 0.0
        %1086 = vmatpush1.msra.mxu0 0.0
        %1087 = vmatprep.subr.mxu0 0.0
        %1088 = vmatpush1.msra.mxu0 0.0
        %1089 = vmatprep.subr.mxu0 0.0
        %1090 = vmatpush1.msra.mxu0 0.0
        %1091 = vmatprep.subr.mxu0 0.0
        %1092 = vmatpush1.msra.mxu0 0.0
        %1093 = vmatprep.subr.mxu0 0.0
        %1094 = vmatpush1.msra.mxu0 0.0
        %1095 = vmatprep.subr.mxu0 0.0
        %1096 = vmatpush1.msra.mxu0 0.0
        %1097 = vmatprep.subr.mxu0 0.0
        %1098 = vmatpush1.msra.mxu0 0.0
        %1099 = vmatprep.subr.mxu0 0.0
        %1100 = vmatpush1.msra.mxu0 0.0
        %1101 = vmatprep.subr.mxu0 0.0
        %1102 = vmatpush1.msra.mxu0 0.0
        %1103 = vmatprep.subr.mxu0 0.0
        %1104 = vmatpush1.msra.mxu0 0.0
        %1105 = vmatprep.subr.mxu0 0.0
        %1106 = vmatpush1.msra.mxu0 0.0
        %1107 = vmatprep.subr.mxu0 0.0
        %1108 = vmatpush1.msra.mxu0 %v1072
        %1109 = vmatprep.subr.mxu0 0.0
        %1110 = vmatpush2.msra.mxu0 0.0
        %1111 = vmatprep.subr.mxu0 0.0
        %1112 = vmatpush2.msra.mxu0 0.0
        %1113 = vmatprep.subr.mxu0 0.0
        %1114 = vmatpush2.msra.mxu0 0.0
        %1115 = vmatprep.subr.mxu0 0.0
        %1116 = vmatpush2.msra.mxu0 0.0
        %1117 = vmatprep.subr.mxu0 0.0
        %1118 = vmatpush2.msra.mxu0 0.0
        %1119 = vmatprep.subr.mxu0 0.0
        %1120 = vmatpush2.msra.mxu0 0.0
        %1121 = vmatprep.subr.mxu0 0.0
        %1122 = vmatpush2.msra.mxu0 0.0
        %1123 = vmatprep.subr.mxu0 0.0
        %1124 = vmatpush2.msra.mxu0 0.0
        %1125 = vmatprep.subr.mxu0 0.0
        %1126 = vmatpush2.msra.mxu0 0.0
        %1127 = vmatprep.subr.mxu0 0.0
        %1128 = vmatpush2.msra.mxu0 0.0
        %1129 = vmatprep.subr.mxu0 0.0
        %1130 = vmatpush2.msra.mxu0 0.0
        %1131 = vmatprep.subr.mxu0 0.0
        %1132 = vmatpush2.msra.mxu0 0.0
        %1133 = vmatprep.subr.mxu0 0.0
        %1134 = vmatpush2.msra.mxu0 0.0
        %1135 = vmatprep.subr.mxu0 0.0
        %1136 = vmatpush2.msra.mxu0 0.0
        %1137 = vmatprep.subr.mxu0 0.0
        %1138 = vmatpush2.msra.mxu0 0.0
        %1139 = vmatprep.subr.mxu0 0.0
        %1140 = vmatpush2.msra.mxu0 0.0
        %1141 = vmatprep.mubr.f32.mxu0 0.0
        %1142 = vmatmul.mubr.f32.gmra.mxu0 %v1075
        %v1143 = vpop.f32.mrf.mxu0
        %v1144 = vadd.f32 0.0, %v1143
        %v1145 = vpop.f32.mrf.mxu0
        %1146 = vdwg.mxu0
        %1148 = vrot.lane.b32.xlu0 %v868, 96
        %v1149 = vpop.permute.xlu0 %1148
        %v1151 = vadd.f32 %v1144, %v1149
        %v1152 = vld [vmem:[%s13] sm:$0x1]
        %v1154 = vlaneseq
        %v1155 = vshrl.u32 %v1154, 7
        %v1156 = vsub.s32 0, %v1155
        %v1157 = vrot.slane %v1152, %v1156
        %v1159 = vadd.f32 %v1151, %v1157
        %v1160 = vmax.f32 %v1159, 0.0
        %v1161 = vld [vmem:[#allocation12] sm:$0xff]
        %v1162 = vld [vmem:[#allocation12 + $0x8] sm:$0xff]
        %v1163 = vld [vmem:[#allocation12 + $0x10] sm:$0xff]
        %v1164 = vld [vmem:[#allocation12 + $0x18] sm:$0xff]
        %v1165 = vld [vmem:[%s14] sm:$0x1]
        %v1167 = vlaneseq
        %v1168 = vshrl.u32 %v1167, 7
        %v1169 = vsub.s32 0, %v1168
        %v1170 = vrot.slane %v1165, %v1169
        %v1173 = vsel %vm797, %v1160, 0
        %1175 = vmatprep.subr.mxu0 0.0
        %1176 = vmatpush1.msra.mxu0 0.0
        %1177 = vmatprep.subr.mxu0 0.0
        %1178 = vmatpush1.msra.mxu0 0.0
        %1179 = vmatprep.subr.mxu0 0.0
        %1180 = vmatpush1.msra.mxu0 0.0
        %1181 = vmatprep.subr.mxu0 0.0
        %1182 = vmatpush1.msra.mxu0 0.0
        %1183 = vmatprep.subr.mxu0 0.0
        %1184 = vmatpush1.msra.mxu0 0.0
        %1185 = vmatprep.subr.mxu0 0.0
        %1186 = vmatpush1.msra.mxu0 0.0
        %1187 = vmatprep.subr.mxu0 0.0
        %1188 = vmatpush1.msra.mxu0 0.0
        %1189 = vmatprep.subr.mxu0 0.0
        %1190 = vmatpush1.msra.mxu0 0.0
        %1191 = vmatprep.subr.mxu0 0.0
        %1192 = vmatpush1.msra.mxu0 0.0
        %1193 = vmatprep.subr.mxu0 0.0
        %1194 = vmatpush1.msra.mxu0 0.0
        %1195 = vmatprep.subr.mxu0 0.0
        %1196 = vmatpush1.msra.mxu0 0.0
        %1197 = vmatprep.subr.mxu0 0.0
        %1198 = vmatpush1.msra.mxu0 0.0
        %1199 = vmatprep.subr.mxu0 0.0
        %1200 = vmatpush1.msra.mxu0 %v1164
        %1201 = vmatprep.subr.mxu0 0.0
        %1202 = vmatpush1.msra.mxu0 %v1163
        %1203 = vmatprep.subr.mxu0 0.0
        %1204 = vmatpush1.msra.mxu0 %v1162
        %1205 = vmatprep.subr.mxu0 0.0
        %1206 = vmatpush1.msra.mxu0 %v1161
        %1207 = vmatprep.subr.mxu0 0.0
        %1208 = vmatpush2.msra.mxu0 0.0
        %1209 = vmatprep.subr.mxu0 0.0
        %1210 = vmatpush2.msra.mxu0 0.0
        %1211 = vmatprep.subr.mxu0 0.0
        %1212 = vmatpush2.msra.mxu0 0.0
        %1213 = vmatprep.subr.mxu0 0.0
        %1214 = vmatpush2.msra.mxu0 0.0
        %1215 = vmatprep.subr.mxu0 0.0
        %1216 = vmatpush2.msra.mxu0 0.0
        %1217 = vmatprep.subr.mxu0 0.0
        %1218 = vmatpush2.msra.mxu0 0.0
        %1219 = vmatprep.subr.mxu0 0.0
        %1220 = vmatpush2.msra.mxu0 0.0
        %1221 = vmatprep.subr.mxu0 0.0
        %1222 = vmatpush2.msra.mxu0 0.0
        %1223 = vmatprep.subr.mxu0 0.0
        %1224 = vmatpush2.msra.mxu0 0.0
        %1225 = vmatprep.subr.mxu0 0.0
        %1226 = vmatpush2.msra.mxu0 0.0
        %1227 = vmatprep.subr.mxu0 0.0
        %1228 = vmatpush2.msra.mxu0 0.0
        %1229 = vmatprep.subr.mxu0 0.0
        %1230 = vmatpush2.msra.mxu0 0.0
        %1231 = vmatprep.subr.mxu0 0.0
        %1232 = vmatpush2.msra.mxu0 0.0
        %1233 = vmatprep.subr.mxu0 0.0
        %1234 = vmatpush2.msra.mxu0 0.0
        %1235 = vmatprep.subr.mxu0 0.0
        %1236 = vmatpush2.msra.mxu0 0.0
        %1237 = vmatprep.subr.mxu0 0.0
        %1238 = vmatpush2.msra.mxu0 0.0
        %1239 = vmatprep.mubr.f32.mxu0 0.0
        %1240 = vmatmul.mubr.f32.gmra.mxu0 %v1173
        %v1241 = vpop.f32.mrf.mxu0
        %v1242 = vadd.f32 %v1170, %v1241
        %v1243 = vpop.f32.mrf.mxu0
        %1244 = vdwg.mxu0
        %v1245 = vmax.f32 %v1242, 0.0
        %v1246 = vld [vmem:[%s9] sm:$0xff]
        %v1247 = vld [vmem:[%s9 + $0x8] sm:$0xff]
        %v1248 = vld [vmem:[%s9 + $0x10] sm:$0xff]
        %v1249 = vld [vmem:[%s9 + $0x18] sm:$0xff]
        %v1250 = vld [vmem:[%s15] sm:$0x1]
        %v1252 = vlaneseq
        %v1253 = vshrl.u32 %v1252, 7
        %v1254 = vsub.s32 0, %v1253
        %v1255 = vrot.slane %v1250, %v1254
        %v1258 = vsel %vm797, %v1245, 0
        %1260 = vmatprep.subr.mxu0 0.0
        %1261 = vmatpush1.msra.mxu0 0.0
        %1262 = vmatprep.subr.mxu0 0.0
        %1263 = vmatpush1.msra.mxu0 0.0
        %1264 = vmatprep.subr.mxu0 0.0
        %1265 = vmatpush1.msra.mxu0 0.0
        %1266 = vmatprep.subr.mxu0 0.0
        %1267 = vmatpush1.msra.mxu0 0.0
        %1268 = vmatprep.subr.mxu0 0.0
        %1269 = vmatpush1.msra.mxu0 0.0
        %1270 = vmatprep.subr.mxu0 0.0
        %1271 = vmatpush1.msra.mxu0 0.0
        %1272 = vmatprep.subr.mxu0 0.0
        %1273 = vmatpush1.msra.mxu0 0.0
        %1274 = vmatprep.subr.mxu0 0.0
        %1275 = vmatpush1.msra.mxu0 0.0
        %1276 = vmatprep.subr.mxu0 0.0
        %1277 = vmatpush1.msra.mxu0 0.0
        %1278 = vmatprep.subr.mxu0 0.0
        %1279 = vmatpush1.msra.mxu0 0.0
        %1280 = vmatprep.subr.mxu0 0.0
        %1281 = vmatpush1.msra.mxu0 0.0
        %1282 = vmatprep.subr.mxu0 0.0
        %1283 = vmatpush1.msra.mxu0 0.0
        %1284 = vmatprep.subr.mxu0 0.0
        %1285 = vmatpush1.msra.mxu0 %v1249
        %1286 = vmatprep.subr.mxu0 0.0
        %1287 = vmatpush1.msra.mxu0 %v1248
        %1288 = vmatprep.subr.mxu0 0.0
        %1289 = vmatpush1.msra.mxu0 %v1247
        %1290 = vmatprep.subr.mxu0 0.0
        %1291 = vmatpush1.msra.mxu0 %v1246
        %1292 = vmatprep.subr.mxu0 0.0
        %1293 = vmatpush2.msra.mxu0 0.0
        %1294 = vmatprep.subr.mxu0 0.0
        %1295 = vmatpush2.msra.mxu0 0.0
        %1296 = vmatprep.subr.mxu0 0.0
        %1297 = vmatpush2.msra.mxu0 0.0
        %1298 = vmatprep.subr.mxu0 0.0
        %1299 = vmatpush2.msra.mxu0 0.0
        %1300 = vmatprep.subr.mxu0 0.0
        %1301 = vmatpush2.msra.mxu0 0.0
        %1302 = vmatprep.subr.mxu0 0.0
        %1303 = vmatpush2.msra.mxu0 0.0
        %1304 = vmatprep.subr.mxu0 0.0
        %1305 = vmatpush2.msra.mxu0 0.0
        %1306 = vmatprep.subr.mxu0 0.0
        %1307 = vmatpush2.msra.mxu0 0.0
        %1308 = vmatprep.subr.mxu0 0.0
        %1309 = vmatpush2.msra.mxu0 0.0
        %1310 = vmatprep.subr.mxu0 0.0
        %1311 = vmatpush2.msra.mxu0 0.0
        %1312 = vmatprep.subr.mxu0 0.0
        %1313 = vmatpush2.msra.mxu0 0.0
        %1314 = vmatprep.subr.mxu0 0.0
        %1315 = vmatpush2.msra.mxu0 0.0
        %1316 = vmatprep.subr.mxu0 0.0
        %1317 = vmatpush2.msra.mxu0 0.0
        %1318 = vmatprep.subr.mxu0 0.0
        %1319 = vmatpush2.msra.mxu0 0.0
        %1320 = vmatprep.subr.mxu0 0.0
        %1321 = vmatpush2.msra.mxu0 0.0
        %1322 = vmatprep.subr.mxu0 0.0
        %1323 = vmatpush2.msra.mxu0 0.0
        %1324 = vmatprep.mubr.f32.mxu0 0.0
        %1325 = vmatmul.mubr.f32.gmra.mxu0 %v1258
        %v1326 = vpop.f32.mrf.mxu0
        %v1327 = vadd.f32 %v1255, %v1326
        %v1328 = vpop.f32.mrf.mxu0
        %1329 = vdwg.mxu0
        %v1330 = vmul.f32 %v1327, 0.5
        %v1331 = vtanh.pop %v1330
        %v1332 = vadd.f32 %v1331, 1.0
        %v1333 = vmul.f32 %v1332, 0.5
        %1334 = vst.msk [vmem:[%s696] sm:$0xff] %vm715, %v1333
        %v1335 = vadd.f32 %v786, %v1144
        %v1336 = vld [vmem:[%s16] sm:$0x1]
        %v1338 = vlaneseq
        %v1339 = vshrl.u32 %v1338, 7
        %v1340 = vsub.s32 0, %v1339
        %v1341 = vrot.slane %v1336, %v1340
        %1342 = vrot.lane.b32.xlu0 %v1341, 32
        %v1343 = vpop.permute.xlu0 %1342
        %v1345 = vadd.f32 %v1335, %v1343
        %v1346 = vld [vmem:[%s17] sm:$0x1]
        %v1348 = vlaneseq
        %v1349 = vshrl.u32 %v1348, 7
        %v1350 = vsub.s32 0, %v1349
        %v1351 = vrot.slane %v1346, %v1350
        %1352 = vrot.lane.b32.xlu0 %v1351, 64
        %v1353 = vpop.permute.xlu0 %1352
        %v1355 = vadd.f32 %v868, %v1353
        %v1356 = vadd.f32 %v870, %v1353
        %1358 = vrot.lane.b32.xlu0 %v1355, 96
        %v1359 = vpop.permute.xlu0 %1358
        %v1361 = vadd.f32 %v1345, %v1359
        %v1362 = vmul.f32 %v1361, 0.5
        %v1363 = vtanh.pop %v1362
        %v1364 = vadd.f32 %v1363, 1.0
        %v1365 = vmul.f32 %v1364, 0.5
        %1367 = vrot.lane.b32.xlu0 %v1356, 32
        %v1368 = vpop.permute.xlu0 %1367
        %v1370 = vmul.f32 %v1365, %v1368
        %1372 = vrot.lane.b32.xlu0 %v1370, 64
        %v1373 = vpop.permute.xlu0 %1372
        %v1375 = vadd.f32 %v1345, %v1373
        %v1376 = vtanh.pop %v1375
        %v1377 = vsub.f32 1.0, %v1365
        %1379 = vrot.lane.b32.xlu0 %v1376, 96
        %v1380 = vpop.permute.xlu0 %1379
        %v1382 = vmul.f32 %v1377, %v1380
        %1383 = vrot.lane.b32.xlu0 %v712, 64
        %v1384 = vpop.permute.xlu0 %1383
        %v1386 = vmul.f32 %v1365, %v1384
        %v1387 = vadd.f32 %v1382, %v1386
        %1389 = vrot.lane.b32.xlu0 %v1387, 64
        %v1390 = vpop.permute.xlu0 %1389
        %1392 = vst.msk [vmem:[#allocation2] sm:$0xff] %vm797, %v1390
        %p1393 = scmp.eq.s32.totalorder %s41, 7
        // Predicated region
        $region121: #{tpu_custom_call.1} parent=91 // pred_check
          %p1394 = pneg %p1393
        $region122: #{tpu_custom_call.1} parent=91 // pred_check_branch
          %1396 = sbr.rel (%p1394) target = $region124
        $region123: #{tpu_custom_call.1} parent=91 // pred_region
          %1397 = vst.msk [vmem:[#allocation15] sm:$0xff] %vm797, %v1390
        $region124: #{tpu_custom_call.1} parent=91 // pred_fallthru
          _
        %s1398 = sand.u32 %s437, 1
        %s1399 = scalar_lea.sflag [#allocation5], %s1398
        %s1400 = sand.u32 %s437, 1
        %s1401 = smul.addr %s1400, 8
        %s1402 = scalar_lea.vmem [#allocation14], %s1401
        // Predicated region
        $region125: #{tpu_custom_call.1} parent=91 // pred_check
          %p1403 = pneg %p447
        $region126: #{tpu_custom_call.1} parent=91 // pred_check_branch
          %1405 = sbr.rel (%p1403) target = $region128
        $region127: #{tpu_custom_call.1} parent=91 // pred_region
          %s1407 = ssub.s32 128, 128
          %1408 = vsyncadd %s1399, %s1407
          %s1409 = smul.addr %s41, 128
          %s1410 = scalar_lea.hbm %s18, %s1409
          %s1412 = sshll.u32 %s1402, 4
          %s1413 = int_to_ptr.vmem [resolvable:$true] %s1412
          %1415 = dma.vmem_to_hbm [thread:$0]  %s1413, 128, %s1410, %s1399
        $region128: #{tpu_custom_call.1} parent=91 // pred_fallthru
          _
        // Predicated region
        $region129: #{tpu_custom_call.1} parent=91 // pred_check
          %p1416 = pneg %p468
        $region130: #{tpu_custom_call.1} parent=91 // pred_check_branch
          %1418 = sbr.rel (%p1416) target = $region132
        $region131: #{tpu_custom_call.1} parent=91 // pred_region
          %s1420 = ssub.s32 128, 128
          %1421 = vsyncadd [#allocation16], %s1420
          %s1423 = sshll.u32 [#allocation15], 4
          %s1424 = int_to_ptr.vmem [resolvable:$true] %s1423
          %1426 = dma.vmem_to_hbm [thread:$0]  %s1424, 128, %s19, [#allocation16]
        $region132: #{tpu_custom_call.1} parent=91 // pred_fallthru
          _
        // Predicated region
        $region133: #{tpu_custom_call.1} parent=91 // pred_check
          %p1427 = pneg %p468
        $region134: #{tpu_custom_call.1} parent=91 // pred_check_branch
          %1429 = sbr.rel (%p1427) target = $region136
        $region135: #{tpu_custom_call.1} parent=91 // pred_region
          %1430 = dma.done [#allocation16], 128
        $region136: #{tpu_custom_call.1} parent=91 // pred_fallthru
          _
      $region92: #{tpu_custom_call.1} parent=5 // pred_fallthru
        _
      %p1431 = scmp.le.s32.totalorder 2, %s36
      // Predicated region
      $region137: #{tpu_custom_call.1} parent=5 // pred_check
        %p1432 = pneg %p1431
      $region138: #{tpu_custom_call.1} parent=5 // pred_check_branch
        %1434 = sbr.rel (%p1432) target = $region140
      $region139: #{tpu_custom_call.1} parent=5 // pred_region
        %s1435 = ssub.s32 %s36, 2
        // Predicated region
        $region141: #{tpu_custom_call.1} parent=139 // pred_check
          %p1436 = pneg %p453
        $region142: #{tpu_custom_call.1} parent=139 // pred_check_branch
          %1438 = sbr.rel (%p1436) target = $region144
        $region143: #{tpu_custom_call.1} parent=139 // pred_region
          %s1439 = sand.u32 %s438, 1
          %s1440 = scalar_lea.sflag [#allocation5], %s1439
          %s1441 = sand.u32 %s438, 1
          %s1442 = smul.addr %s1441, 8
          %s1443 = scalar_lea.vmem [#allocation14], %s1442
          %1444 = dma.done %s1440, 128
        $region144: #{tpu_custom_call.1} parent=139 // pred_fallthru
          _
      $region140: #{tpu_custom_call.1} parent=5 // pred_fallthru
        _
    $region6: #{tpu_custom_call.1} parent=1 // loop_footer
      %s40 = sadd.s32 1, %s36
    $region7: #{tpu_custom_call.1} parent=1 // loop_footer_branch
      %35 = sbr.rel target = $region3
    $region8: #{tpu_custom_call.1} parent=1 // loop_exit
      _
    %1445 = vsyncpa [#allocation4], 1
    %s1446 = scalar_lea.sflag [#allocation4], 1
    %1447 = vsyncpa %s1446, 1
    %1448 = vsyncpa [#allocation7], 1
    %1449 = vsyncpa [#allocation10], 1
    %1450 = vsyncpa [#allocation13], 1
    %1451 = vsyncpa [#allocation5], 1
    %s1452 = scalar_lea.sflag [#allocation5], 1
    %1453 = vsyncpa %s1452, 1
    %1454 = vsyncpa [#allocation16], 1

</llo_original>
